<compile_context>
chip_gen: v6e
topology: v6e:2x2x1
jax: 0.10.0
libtpu: 0.0.40
codegen_flags: <defaults>
</compile_context>

<pallas_src>
import functools
import math

import jax
import jax.numpy as jnp
from jax.experimental import pallas as pl
from jax.experimental.pallas import tpu as pltpu

NEG_INF = float(jnp.finfo(jnp.float32).min)
VMEM_LIMIT = 32 * 1024 * 1024


# ----------------------------- in-kernel helpers -----------------------------
def _layer_norm(x, g, b, eps):
    # torch.nn.LayerNorm: biased variance over last dim (f32 elementwise path).
    mu = jnp.mean(x, axis=-1, keepdims=True)
    var = jnp.mean((x - mu) ** 2, axis=-1, keepdims=True)
    return (x - mu) * jax.lax.rsqrt(var + eps) * g + b


def _attention(q, k, v, keep, num_heads, inv_scale):
    """Masked softmax attention.  q:[tq,D] k,v:[tk,D] (f32), keep:[tq,tk] bool."""
    tq, d = q.shape
    tk = k.shape[0]
    if num_heads == 1:
        s = jnp.einsum("qd,kd->qk", q.astype(jnp.bfloat16), k.astype(jnp.bfloat16),
                       preferred_element_type=jnp.float32) * inv_scale
        s = jnp.where(keep, s, NEG_INF)
        s = s - jnp.max(s, axis=-1, keepdims=True)
        p = jnp.exp(s)
        p = p * pl.reciprocal(jnp.sum(p, axis=-1, keepdims=True), approx=True)
        # TODO(synk): attention dropout omitted (eval mode).
        return jnp.dot(p.astype(jnp.bfloat16), v.astype(jnp.bfloat16),
                       preferred_element_type=jnp.float32)
    # Multi-head: batched over heads in a single strided MXU sequence.
    hd = d // num_heads
    qh = q.reshape(tq, num_heads, hd).astype(jnp.bfloat16)
    kh = k.reshape(tk, num_heads, hd).astype(jnp.bfloat16)
    vh = v.reshape(tk, num_heads, hd).astype(jnp.bfloat16)
    s = jnp.einsum("qhd,khd->hqk", qh, kh,
                   preferred_element_type=jnp.float32) * inv_scale
    s = jnp.where(keep[None, :, :], s, NEG_INF)
    s = s - jnp.max(s, axis=-1, keepdims=True)
    p = jnp.exp(s)
    p = p * pl.reciprocal(jnp.sum(p, axis=-1, keepdims=True), approx=True)
    ctx = jnp.einsum("hqk,khd->qhd", p.astype(jnp.bfloat16), vh,
                     preferred_element_type=jnp.float32)
    return ctx.reshape(tq, d)


# ------------------------------ Pallas kernels --------------------------------
def decoder_layer_kernel(xq_ref, xf_ref, enc_ref, tpad_ref, epad_ref,
                         ln_g_ref, ln_b_ref,
                         w_sa_qkv_ref, b_sa_qkv_ref, w_sa_o_ref, b_sa_o_ref,
                         w_ca_q_ref, b_ca_q_ref, w_ca_kv_ref, b_ca_kv_ref,
                         w_ca_o_ref, b_ca_o_ref,
                         w1_ref, b1_ref, w2_ref, b2_ref,
                         out_ref, *, num_heads, eps, q_tile, causal):
    x = xq_ref[0]                       # [tq, D] f32 (residual stream)
    tq, d = x.shape
    t_full = xf_ref.shape[1]
    tk = enc_ref.shape[1]
    inv_scale = 1.0 / math.sqrt(d // num_heads)
    ln_g = ln_g_ref[...]                # [3, D] (tiny)
    ln_b = ln_b_ref[...]
    q0 = pl.program_id(1) * q_tile      # global offset of this query tile

    # ---- keep-masks built in-kernel (no O(T^2) HBM traffic) ----
    sa_keep = jnp.broadcast_to(tpad_ref[0] > 0.0, (tq, t_full))
    if causal:
        kpos = jax.lax.broadcasted_iota(jnp.int32, (tq, t_full), 1)
        qpos = jax.lax.broadcasted_iota(jnp.int32, (tq, t_full), 0) + q0
        sa_keep = jnp.logical_and(sa_keep, kpos <= qpos)
    ca_keep = jnp.broadcast_to(epad_ref[0] > 0.0, (tq, tk))

    # ---- pre-norm self-attention ----
    xn_q = _layer_norm(x, ln_g[0], ln_b[0], eps).astype(jnp.bfloat16)
    if q_tile == t_full:
        # single fused QKV matmul (one MXU weight push)
        qkv = (jnp.dot(xn_q, w_sa_qkv_ref[...],
                       preferred_element_type=jnp.float32) + b_sa_qkv_ref[...])
        q_p = qkv[:, 0:d]
        k_p = qkv[:, d:2 * d]
        v_p = qkv[:, 2 * d:3 * d]
    else:
        # query tile uses the Q slice; K/V come from the full target sequence
        xn_f = _layer_norm(xf_ref[0], ln_g[0], ln_b[0], eps).astype(jnp.bfloat16)
        q_p = (jnp.dot(xn_q, w_sa_qkv_ref[:, 0:d],
                       preferred_element_type=jnp.float32) + b_sa_qkv_ref[:, 0:d])
        kv = (jnp.dot(xn_f, w_sa_qkv_ref[:, d:3 * d],
                      preferred_element_type=jnp.float32) + b_sa_qkv_ref[:, d:3 * d])
        k_p = kv[:, 0:d]
        v_p = kv[:, d:2 * d]
    ctx = _attention(q_p, k_p, v_p, sa_keep, num_heads, inv_scale)
    x = x + jnp.dot(ctx.astype(jnp.bfloat16), w_sa_o_ref[...],
                    preferred_element_type=jnp.float32) + b_sa_o_ref[...]

    # ---- pre-norm cross-attention ----
    xn = _layer_norm(x, ln_g[1], ln_b[1], eps).astype(jnp.bfloat16)
    q_p = (jnp.dot(xn, w_ca_q_ref[...],
                   preferred_element_type=jnp.float32) + b_ca_q_ref[...])
    enc_b = enc_ref[0].astype(jnp.bfloat16)
    kv = (jnp.dot(enc_b, w_ca_kv_ref[...],
                  preferred_element_type=jnp.float32) + b_ca_kv_ref[...])
    ctx = _attention(q_p, kv[:, 0:d], kv[:, d:2 * d], ca_keep, num_heads, inv_scale)
    x = x + jnp.dot(ctx.astype(jnp.bfloat16), w_ca_o_ref[...],
                    preferred_element_type=jnp.float32) + b_ca_o_ref[...]

    # ---- pre-norm position-wise feed-forward (ReLU) ----
    xn = _layer_norm(x, ln_g[2], ln_b[2], eps).astype(jnp.bfloat16)
    h = jnp.dot(xn, w1_ref[...], preferred_element_type=jnp.float32) + b1_ref[...]
    h = jnp.maximum(h, 0.0).astype(jnp.bfloat16)
    x = x + jnp.dot(h, w2_ref[...], preferred_element_type=jnp.float32) + b2_ref[...]

    out_ref[0] = x


def head_kernel(x_ref, g_ref, b_ref, wh_ref, bh_ref, out_ref, *, eps):
    # tail LayerNorm + vocab-tiled projection (lane-dense 128-multiple output)
    xn = _layer_norm(x_ref[0], g_ref[0], b_ref[0], eps)
    out_ref[0] = (jnp.dot(xn.astype(jnp.bfloat16), wh_ref[...],
                          preferred_element_type=jnp.float32) + bh_ref[...])


# ------------------------------ wrappers --------------------------------------
def _const_spec(shape):
    return pl.BlockSpec(shape, lambda *args, _n=len(shape): (0,) * _n)


def run_decoder_layer(x, enc, tpad, epad, p, *, num_heads, eps, causal, q_tile):
    n, t, d = x.shape
    tk = enc.shape[1]
    f = p["w1"].shape[-1]
    n_qt = t // q_tile
    kern = functools.partial(decoder_layer_kernel, num_heads=num_heads, eps=eps,
                             q_tile=q_tile, causal=causal)
    return pl.pallas_call(
        kern,
        out_shape=jax.ShapeDtypeStruct((n, t, d), jnp.float32),
        grid=(n, n_qt),
        in_specs=[
            pl.BlockSpec((1, q_tile, d), lambda b, qi: (b, qi, 0)),   # query tile
            pl.BlockSpec((1, t, d), lambda b, qi: (b, 0, 0)),         # full tgt (self-attn K/V)
            pl.BlockSpec((1, tk, d), lambda b, qi: (b, 0, 0)),        # encoder
            pl.BlockSpec((1, 1, t), lambda b, qi: (b, 0, 0)),         # tgt pad mask
            pl.BlockSpec((1, 1, tk), lambda b, qi: (b, 0, 0)),        # enc pad mask
            _const_spec((3, d)), _const_spec((3, d)),
            _const_spec((d, 3 * d)), _const_spec((1, 3 * d)),
            _const_spec((d, d)), _const_spec((1, d)),
            _const_spec((d, d)), _const_spec((1, d)),
            _const_spec((d, 2 * d)), _const_spec((1, 2 * d)),
            _const_spec((d, d)), _const_spec((1, d)),
            _const_spec((d, f)), _const_spec((1, f)),
            _const_spec((f, d)), _const_spec((1, d)),
        ],
        out_specs=pl.BlockSpec((1, q_tile, d), lambda b, qi: (b, qi, 0)),
        compiler_params=pltpu.CompilerParams(
            dimension_semantics=("parallel", "parallel"),
            vmem_limit_bytes=VMEM_LIMIT),
    )(x, x, enc, tpad, epad, p["ln_g"], p["ln_b"],
      p["w_sa_qkv"], p["b_sa_qkv"], p["w_sa_o"], p["b_sa_o"],
      p["w_ca_q"], p["b_ca_q"], p["w_ca_kv"], p["b_ca_kv"],
      p["w_ca_o"], p["b_ca_o"],
      p["w1"], p["b1"], p["w2"], p["b2"])


def run_head(x, g, b, wh, bh, *, eps, q_tile, v_tile):
    n, t, d = x.shape
    vp = wh.shape[-1]
    n_qt = t // q_tile
    n_vt = vp // v_tile
    kern = functools.partial(head_kernel, eps=eps)
    return pl.pallas_call(
        kern,
        out_shape=jax.ShapeDtypeStruct((n, t, vp), jnp.float32),
        grid=(n, n_qt, n_vt),
        in_specs=[
            pl.BlockSpec((1, q_tile, d), lambda bi, qi, vi: (bi, qi, 0)),
            pl.BlockSpec((1, d), lambda bi, qi, vi: (0, 0)),
            pl.BlockSpec((1, d), lambda bi, qi, vi: (0, 0)),
            pl.BlockSpec((d, v_tile), lambda bi, qi, vi: (0, vi)),
            pl.BlockSpec((1, v_tile), lambda bi, qi, vi: (0, vi)),
        ],
        out_specs=pl.BlockSpec((1, q_tile, v_tile), lambda bi, qi, vi: (bi, qi, vi)),
        compiler_params=pltpu.CompilerParams(
            dimension_semantics=("parallel", "parallel", "parallel"),
            vmem_limit_bytes=VMEM_LIMIT),
    )(x, g, b, wh, bh)


# ------------------------------ glue / params ---------------------------------
def xavier_uniform(key, fan_in, fan_out, gain=1.0):
    # Returned as [in, out] so the kernel computes x @ W (== torch x @ W.T).
    limit = gain * math.sqrt(6.0 / (fan_in + fan_out))
    return jax.random.uniform(key, (fan_in, fan_out), jnp.float32, -limit, limit)


def make_attention_params(key, d):
    ks = jax.random.split(key, 4)
    g = 1.0 / math.sqrt(2.0)  # qkv_same_dim path
    wq = xavier_uniform(ks[0], d, d, g)
    wk = xavier_uniform(ks[1], d, d, g)
    wv = xavier_uniform(ks[2], d, d, g)
    wo = xavier_uniform(ks[3], d, d, 1.0)
    return wq, wk, wv, wo


def make_layer_params(key, d, f):
    k_sa, k_ca, k1, k2 = jax.random.split(key, 4)
    sq, sk, sv, so = make_attention_params(k_sa, d)
    cq, ck, cv, co = make_attention_params(k_ca, d)
    bf = lambda a: a.astype(jnp.bfloat16)   # MXU operands stored in bf16
    return dict(
        ln_g=jnp.ones((3, d), jnp.float32),
        ln_b=jnp.zeros((3, d), jnp.float32),
        w_sa_qkv=bf(jnp.concatenate([sq, sk, sv], axis=1)),
        b_sa_qkv=jnp.zeros((1, 3 * d), jnp.float32),
        w_sa_o=bf(so), b_sa_o=jnp.zeros((1, d), jnp.float32),
        w_ca_q=bf(cq), b_ca_q=jnp.zeros((1, d), jnp.float32),
        w_ca_kv=bf(jnp.concatenate([ck, cv], axis=1)),
        b_ca_kv=jnp.zeros((1, 2 * d), jnp.float32),
        w_ca_o=bf(co), b_ca_o=jnp.zeros((1, d), jnp.float32),
        w1=bf(xavier_uniform(k1, d, f)), b1=jnp.zeros((1, f), jnp.float32),
        w2=bf(xavier_uniform(k2, f, d)), b2=jnp.zeros((1, d), jnp.float32),
    )


def positional_encoding(tq, d):
    pos = jnp.arange(tq, dtype=jnp.float32)[:, None]
    div = jnp.exp(jnp.arange(0, d, 2, dtype=jnp.float32)
                  * (-(math.log(10000.0) / d)))
    pe = jnp.zeros((tq, d), jnp.float32)
    pe = pe.at[:, 0::2].set(jnp.sin(pos * div))
    pe = pe.at[:, 1::2].set(jnp.cos(pos * div))
    return pe


def transformer_decoder_forward(tokens, enc_feature, params, *,
                                tgt_key_padding_mask=None,
                                enc_key_padding_mask=None,
                                causal=True, num_heads, eps):
    n, tq = tokens.shape
    tk = enc_feature.shape[1]
    d = params["emb"].shape[1]
    vocab = params["emb"].shape[0]
    assert d % num_heads == 0

    # Embedding + scaling + positional encoding (glue; lookup is not the hot path).
    # NOTE: the reference module scales by sqrt(vocab_size), so we keep that.
    x = params["emb"][tokens] * math.sqrt(vocab)
    x = x + positional_encoding(tq, d)[None]
    # TODO(synk): positional-encoding / residual dropouts omitted (eval mode).

    if tgt_key_padding_mask is None:
        tgt_key_padding_mask = jnp.ones((n, tq), jnp.float32)
    if enc_key_padding_mask is None:
        enc_key_padding_mask = jnp.ones((n, tk), jnp.float32)
    tpad = tgt_key_padding_mask.astype(jnp.float32)[:, None, :]   # [N, 1, Tq]
    epad = enc_key_padding_mask.astype(jnp.float32)[:, None, :]   # [N, 1, Tk]
    # TODO(synk): arbitrary (non lower-triangular) causal masks not supported;
    # the causal mask is rebuilt in-kernel from iota comparisons.

    q_tile = tq if tq <= 128 else 128
    assert tq % q_tile == 0

    enc_feature = enc_feature.astype(jnp.float32)
    for lp in params["layers"]:
        x = run_decoder_layer(x, enc_feature, tpad, epad, lp,
                              num_heads=num_heads, eps=eps,
                              causal=causal, q_tile=q_tile)

    # Tail norm + head: pad vocab up to a multiple of 128 (lane-dense stores),
    # tile it on the grid, slice the pad off afterwards.
    wh = params["head_w"].astype(jnp.bfloat16)
    bh = params["head_b"]
    v = wh.shape[-1]
    vp = ((v + 127) // 128) * 128
    if vp != v:
        wh = jnp.pad(wh, ((0, 0), (0, vp - v)))
        bh = jnp.pad(bh, ((0, 0), (0, vp - v)))
    v_tile = min(vp, 512)
    logits = run_head(x, params["tail_g"], params["tail_b"], wh, bh,
                      eps=eps, q_tile=q_tile, v_tile=v_tile)
    return logits[..., :v]


# ------------------------------ main ------------------------------------------
if __name__ == "__main__":
    # Small shapes consistent with the module defaults.
    N, TQ, TK = 2, 8, 16
    D, F, V, H = 64, 256, 100, 1
    NUM_LAYERS = 1
    EPS = 1e-5
    PADDING_IDX = 0

    root = jax.random.PRNGKey(0)
    k_emb, k_head, k_enc, k_tok, *k_layers = jax.random.split(root, 4 + NUM_LAYERS)

    emb = jax.random.normal(k_emb, (V, D), jnp.float32) * (D ** -0.5)
    emb = emb.at[PADDING_IDX].set(0.0)

    params = dict(
        emb=emb,
        layers=[make_layer_params(k_layers[i], D, F) for i in range(NUM_LAYERS)],
        tail_g=jnp.ones((1, D), jnp.float32),
        tail_b=jnp.zeros((1, D), jnp.float32),
        head_w=xavier_uniform(k_head, D, V),
        head_b=jnp.zeros((1, V), jnp.float32),
    )

    tokens = jax.random.randint(k_tok, (N, TQ), 0, V).astype(jnp.int32)
    enc_feature = jax.random.normal(k_enc, (N, TK, D), jnp.float32)

    tgt_key_padding_mask = jnp.ones((N, TQ), jnp.float32).at[1, TQ - 2:].set(0.0)
    enc_key_padding_mask = jnp.ones((N, TK), jnp.float32).at[0, TK - 3:].set(0.0)

    logits = transformer_decoder_forward(
        tokens, enc_feature, params,
        tgt_key_padding_mask=tgt_key_padding_mask,
        enc_key_padding_mask=enc_key_padding_mask,
        causal=True, num_heads=H, eps=EPS)
    logits = jax.block_until_ready(logits)

    assert logits.shape == (N, TQ, V) and logits.dtype == jnp.float32
    assert bool(jnp.all(jnp.isfinite(logits)))
    print("KERNEL_OK")
</pallas_src>

<mosaic_0001>
module attributes {stable_mosaic.version = 11 : i64} {
  func.func @decoder_layer_kernel(%arg0: i32, %arg1: i32, %arg2: memref<1x8x64xf32, #tpu.memory_space<vmem>>, %arg3: memref<1x8x64xf32, #tpu.memory_space<vmem>>, %arg4: memref<1x16x64xf32, #tpu.memory_space<vmem>>, %arg5: memref<1x1x8xf32, #tpu.memory_space<vmem>>, %arg6: memref<1x1x16xf32, #tpu.memory_space<vmem>>, %arg7: memref<3x64xf32, #tpu.memory_space<vmem>>, %arg8: memref<3x64xf32, #tpu.memory_space<vmem>>, %arg9: memref<64x192xbf16, #tpu.memory_space<vmem>>, %arg10: memref<1x192xf32, #tpu.memory_space<vmem>>, %arg11: memref<64x64xbf16, #tpu.memory_space<vmem>>, %arg12: memref<1x64xf32, #tpu.memory_space<vmem>>, %arg13: memref<64x64xbf16, #tpu.memory_space<vmem>>, %arg14: memref<1x64xf32, #tpu.memory_space<vmem>>, %arg15: memref<64x128xbf16, #tpu.memory_space<vmem>>, %arg16: memref<1x128xf32, #tpu.memory_space<vmem>>, %arg17: memref<64x64xbf16, #tpu.memory_space<vmem>>, %arg18: memref<1x64xf32, #tpu.memory_space<vmem>>, %arg19: memref<64x256xbf16, #tpu.memory_space<vmem>>, %arg20: memref<1x256xf32, #tpu.memory_space<vmem>>, %arg21: memref<256x64xbf16, #tpu.memory_space<vmem>>, %arg22: memref<1x64xf32, #tpu.memory_space<vmem>>, %arg23: memref<1x8x64xf32, #tpu.memory_space<vmem>>) attributes {dimension_semantics = [#tpu.dimension_semantics<parallel>, #tpu.dimension_semantics<parallel>], iteration_bounds = array<i64: 2, 1>, scalar_prefetch = 0 : i64, scratch_operands = 0 : i64, tpu.core_type = #tpu.core_type<tc>, window_params = [{transform_indices = @transform_0, window_bounds = array<i64: 1, 8, 64>}, {transform_indices = @transform_1, window_bounds = array<i64: 1, 8, 64>}, {transform_indices = @transform_2, window_bounds = array<i64: 1, 16, 64>}, {transform_indices = @transform_3, window_bounds = array<i64: 1, 1, 8>}, {transform_indices = @transform_4, window_bounds = array<i64: 1, 1, 16>}, {pipeline_mode = #tpu.pipeline_mode<synchronous>, transform_indices = @transform_5, window_bounds = array<i64: 3, 64>}, {pipeline_mode = #tpu.pipeline_mode<synchronous>, transform_indices = @transform_6, window_bounds = array<i64: 3, 64>}, {pipeline_mode = #tpu.pipeline_mode<synchronous>, transform_indices = @transform_7, window_bounds = array<i64: 64, 192>}, {pipeline_mode = #tpu.pipeline_mode<synchronous>, transform_indices = @transform_8, window_bounds = array<i64: 1, 192>}, {pipeline_mode = #tpu.pipeline_mode<synchronous>, transform_indices = @transform_9, window_bounds = array<i64: 64, 64>}, {pipeline_mode = #tpu.pipeline_mode<synchronous>, transform_indices = @transform_10, window_bounds = array<i64: 1, 64>}, {pipeline_mode = #tpu.pipeline_mode<synchronous>, transform_indices = @transform_11, window_bounds = array<i64: 64, 64>}, {pipeline_mode = #tpu.pipeline_mode<synchronous>, transform_indices = @transform_12, window_bounds = array<i64: 1, 64>}, {pipeline_mode = #tpu.pipeline_mode<synchronous>, transform_indices = @transform_13, window_bounds = array<i64: 64, 128>}, {pipeline_mode = #tpu.pipeline_mode<synchronous>, transform_indices = @transform_14, window_bounds = array<i64: 1, 128>}, {pipeline_mode = #tpu.pipeline_mode<synchronous>, transform_indices = @transform_15, window_bounds = array<i64: 64, 64>}, {pipeline_mode = #tpu.pipeline_mode<synchronous>, transform_indices = @transform_16, window_bounds = array<i64: 1, 64>}, {pipeline_mode = #tpu.pipeline_mode<synchronous>, transform_indices = @transform_17, window_bounds = array<i64: 64, 256>}, {pipeline_mode = #tpu.pipeline_mode<synchronous>, transform_indices = @transform_18, window_bounds = array<i64: 1, 256>}, {pipeline_mode = #tpu.pipeline_mode<synchronous>, transform_indices = @transform_19, window_bounds = array<i64: 256, 64>}, {pipeline_mode = #tpu.pipeline_mode<synchronous>, transform_indices = @transform_20, window_bounds = array<i64: 1, 64>}, {transform_indices = @transform_21, window_bounds = array<i64: 1, 8, 64>}]} {
    %c0 = arith.constant 0 : index
    %c0_0 = arith.constant 0 : index
    %c0_1 = arith.constant 0 : index
    %0 = vector.load %arg2[%c0, %c0_0, %c0_1] : memref<1x8x64xf32, #tpu.memory_space<vmem>>, vector<1x8x64xf32>
    %1 = vector.shape_cast %0 : vector<1x8x64xf32> to vector<8x64xf32>
    %c0_2 = arith.constant 0 : index
    %c0_3 = arith.constant 0 : index
    %2 = vector.load %arg7[%c0_2, %c0_3] : memref<3x64xf32, #tpu.memory_space<vmem>>, vector<3x64xf32>
    %c0_4 = arith.constant 0 : index
    %c0_5 = arith.constant 0 : index
    %3 = vector.load %arg8[%c0_4, %c0_5] : memref<3x64xf32, #tpu.memory_space<vmem>>, vector<3x64xf32>
    %c8_i32 = arith.constant 8 : i32
    %4 = arith.muli %arg1, %c8_i32 : i32
    %c0_6 = arith.constant 0 : index
    %c0_7 = arith.constant 0 : index
    %c0_8 = arith.constant 0 : index
    %5 = vector.load %arg5[%c0_6, %c0_7, %c0_8] : memref<1x1x8xf32, #tpu.memory_space<vmem>>, vector<1x1x8xf32>
    %6 = vector.shape_cast %5 : vector<1x1x8xf32> to vector<1x8xf32>
    %cst = arith.constant 0.000000e+00 : f32
    %7 = vector.broadcast %cst : f32 to vector<1x8xf32>
    %8 = arith.cmpf ogt, %6, %7 : vector<1x8xf32>
    %9 = vector.shape_cast %8 : vector<1x8xi1> to vector<1x8xi1>
    %10 = vector.broadcast %9 : vector<1x8xi1> to vector<8x8xi1>
    %11 = tpu.iota {dimensions = array<i32: 1>} : vector<8x8xi32>
    %12 = tpu.iota {dimensions = array<i32: 0>} : vector<8x8xi32>
    %13 = vector.broadcast %4 : i32 to vector<8x8xi32>
    %14 = arith.addi %12, %13 : vector<8x8xi32>
    %15 = arith.cmpi sle, %11, %14 : vector<8x8xi32>
    %16 = arith.andi %10, %15 : vector<8x8xi1>
    %c0_9 = arith.constant 0 : index
    %c0_10 = arith.constant 0 : index
    %c0_11 = arith.constant 0 : index
    %17 = vector.load %arg6[%c0_9, %c0_10, %c0_11] : memref<1x1x16xf32, #tpu.memory_space<vmem>>, vector<1x1x16xf32>
    %18 = vector.shape_cast %17 : vector<1x1x16xf32> to vector<1x16xf32>
    %cst_12 = arith.constant 0.000000e+00 : f32
    %19 = vector.broadcast %cst_12 : f32 to vector<1x16xf32>
    %20 = arith.cmpf ogt, %18, %19 : vector<1x16xf32>
    %21 = vector.shape_cast %20 : vector<1x16xi1> to vector<1x16xi1>
    %22 = vector.broadcast %21 : vector<1x16xi1> to vector<8x16xi1>
    %23 = vector.extract_strided_slice %2 {offsets = [0, 0], sizes = [1, 64], strides = [1, 1]} : vector<3x64xf32> to vector<1x64xf32>
    %24 = vector.shape_cast %23 : vector<1x64xf32> to vector<64xf32>
    %25 = vector.extract_strided_slice %3 {offsets = [0, 0], sizes = [1, 64], strides = [1, 1]} : vector<3x64xf32> to vector<1x64xf32>
    %26 = vector.shape_cast %25 : vector<1x64xf32> to vector<64xf32>
    %cst_13 = arith.constant dense<0.000000e+00> : vector<8xf32>
    %27 = vector.multi_reduction <add>, %1, %cst_13 [1] : vector<8x64xf32> to vector<8xf32>
    %28 = vector.shape_cast %27 : vector<8xf32> to vector<8x1xf32>
    %cst_14 = arith.constant 6.400000e+01 : f32
    %29 = vector.broadcast %cst_14 : f32 to vector<8x1xf32>
    %30 = arith.divf %28, %29 : vector<8x1xf32>
    %31 = vector.broadcast %30 : vector<8x1xf32> to vector<8x64xf32>
    %32 = arith.subf %1, %31 : vector<8x64xf32>
    %33 = arith.mulf %32, %32 : vector<8x64xf32>
    %cst_15 = arith.constant dense<0.000000e+00> : vector<8xf32>
    %34 = vector.multi_reduction <add>, %33, %cst_15 [1] : vector<8x64xf32> to vector<8xf32>
    %35 = vector.shape_cast %34 : vector<8xf32> to vector<8x1xf32>
    %cst_16 = arith.constant 6.400000e+01 : f32
    %36 = vector.broadcast %cst_16 : f32 to vector<8x1xf32>
    %37 = arith.divf %35, %36 : vector<8x1xf32>
    %38 = vector.broadcast %30 : vector<8x1xf32> to vector<8x64xf32>
    %39 = arith.subf %1, %38 : vector<8x64xf32>
    %cst_17 = arith.constant 9.99999974E-6 : f32
    %40 = vector.broadcast %cst_17 : f32 to vector<8x1xf32>
    %41 = arith.addf %37, %40 : vector<8x1xf32>
    %42 = math.rsqrt %41 : vector<8x1xf32>
    %43 = vector.broadcast %42 : vector<8x1xf32> to vector<8x64xf32>
    %44 = arith.mulf %39, %43 : vector<8x64xf32>
    %45 = vector.shape_cast %24 : vector<64xf32> to vector<1x64xf32>
    %46 = vector.broadcast %45 : vector<1x64xf32> to vector<8x64xf32>
    %47 = arith.mulf %44, %46 : vector<8x64xf32>
    %48 = vector.shape_cast %26 : vector<64xf32> to vector<1x64xf32>
    %49 = vector.broadcast %48 : vector<1x64xf32> to vector<8x64xf32>
    %50 = arith.addf %47, %49 : vector<8x64xf32>
    %51 = arith.truncf %50 : vector<8x64xf32> to vector<8x64xbf16>
    %c0_18 = arith.constant 0 : index
    %c0_19 = arith.constant 0 : index
    %52 = vector.load %arg9[%c0_18, %c0_19] : memref<64x192xbf16, #tpu.memory_space<vmem>>, vector<64x192xbf16>
    %cst_20 = arith.constant dense<0.000000e+00> : vector<8x192xf32>
    %53 = tpu.matmul %51, %52, %cst_20 {dimension_numbers = #tpu.dot_dimension_numbers<[1], [0], [0], [1], [0, 0, 1, 1], [], []>} : vector<8x64xbf16>, vector<64x192xbf16>, vector<8x192xf32> -> vector<8x192xf32>
    %c0_21 = arith.constant 0 : index
    %c0_22 = arith.constant 0 : index
    %54 = vector.load %arg10[%c0_21, %c0_22] : memref<1x192xf32, #tpu.memory_space<vmem>>, vector<1x192xf32>
    %55 = vector.broadcast %54 : vector<1x192xf32> to vector<8x192xf32>
    %56 = arith.addf %53, %55 : vector<8x192xf32>
    %57 = vector.extract_strided_slice %56 {offsets = [0, 0], sizes = [8, 64], strides = [1, 1]} : vector<8x192xf32> to vector<8x64xf32>
    %58 = vector.extract_strided_slice %56 {offsets = [0, 64], sizes = [8, 64], strides = [1, 1]} : vector<8x192xf32> to vector<8x64xf32>
    %59 = vector.extract_strided_slice %56 {offsets = [0, 128], sizes = [8, 64], strides = [1, 1]} : vector<8x192xf32> to vector<8x64xf32>
    %60 = arith.truncf %57 : vector<8x64xf32> to vector<8x64xbf16>
    %61 = arith.truncf %58 : vector<8x64xf32> to vector<8x64xbf16>
    "tpu.trace_start"() <{level = 10 : i32, message = "qd,kd->qk"}> : () -> ()
    %cst_23 = arith.constant dense<0.000000e+00> : vector<8x8xf32>
    %62 = tpu.matmul %60, %61, %cst_23 {dimension_numbers = #tpu.dot_dimension_numbers<[1], [1], [0], [0], [0, 0, 1, 0], [], []>} : vector<8x64xbf16>, vector<8x64xbf16>, vector<8x8xf32> -> vector<8x8xf32>
    "tpu.trace_stop"() : () -> ()
    %cst_24 = arith.constant 1.250000e-01 : f32
    %63 = vector.broadcast %cst_24 : f32 to vector<8x8xf32>
    %64 = arith.mulf %62, %63 : vector<8x8xf32>
    %cst_25 = arith.constant -3.40282347E+38 : f32
    %65 = vector.broadcast %cst_25 : f32 to vector<8x8xf32>
    %66 = arith.select %16, %64, %65 : vector<8x8xi1>, vector<8x8xf32>
    %cst_26 = arith.constant dense<0xFF800000> : vector<8xf32>
    %67 = vector.multi_reduction <maximumf>, %66, %cst_26 [1] : vector<8x8xf32> to vector<8xf32>
    %68 = vector.shape_cast %67 : vector<8xf32> to vector<8x1xf32>
    %69 = vector.broadcast %68 : vector<8x1xf32> to vector<8x8xf32>
    %70 = arith.subf %66, %69 : vector<8x8xf32>
    %71 = math.exp %70 : vector<8x8xf32>
    %cst_27 = arith.constant dense<0.000000e+00> : vector<8xf32>
    %72 = vector.multi_reduction <add>, %71, %cst_27 [1] : vector<8x8xf32> to vector<8xf32>
    %73 = vector.shape_cast %72 : vector<8xf32> to vector<8x1xf32>
    %74 = tpu.reciprocal %73 {approx = true} : vector<8x1xf32> -> vector<8x1xf32>
    %75 = vector.broadcast %74 : vector<8x1xf32> to vector<8x8xf32>
    %76 = arith.mulf %71, %75 : vector<8x8xf32>
    %77 = arith.truncf %76 : vector<8x8xf32> to vector<8x8xbf16>
    %78 = arith.truncf %59 : vector<8x64xf32> to vector<8x64xbf16>
    %cst_28 = arith.constant dense<0.000000e+00> : vector<8x64xf32>
    %79 = tpu.matmul %77, %78, %cst_28 {dimension_numbers = #tpu.dot_dimension_numbers<[1], [0], [0], [1], [0, 0, 1, 1], [], []>} : vector<8x8xbf16>, vector<8x64xbf16>, vector<8x64xf32> -> vector<8x64xf32>
    %80 = arith.truncf %79 : vector<8x64xf32> to vector<8x64xbf16>
    %c0_29 = arith.constant 0 : index
    %c0_30 = arith.constant 0 : index
    %81 = vector.load %arg11[%c0_29, %c0_30] : memref<64x64xbf16, #tpu.memory_space<vmem>>, vector<64x64xbf16>
    %cst_31 = arith.constant dense<0.000000e+00> : vector<8x64xf32>
    %82 = tpu.matmul %80, %81, %cst_31 {dimension_numbers = #tpu.dot_dimension_numbers<[1], [0], [0], [1], [0, 0, 1, 1], [], []>} : vector<8x64xbf16>, vector<64x64xbf16>, vector<8x64xf32> -> vector<8x64xf32>
    %83 = arith.addf %1, %82 : vector<8x64xf32>
    %c0_32 = arith.constant 0 : index
    %c0_33 = arith.constant 0 : index
    %84 = vector.load %arg12[%c0_32, %c0_33] : memref<1x64xf32, #tpu.memory_space<vmem>>, vector<1x64xf32>
    %85 = vector.broadcast %84 : vector<1x64xf32> to vector<8x64xf32>
    %86 = arith.addf %83, %85 : vector<8x64xf32>
    %87 = vector.extract_strided_slice %2 {offsets = [1, 0], sizes = [1, 64], strides = [1, 1]} : vector<3x64xf32> to vector<1x64xf32>
    %88 = vector.shape_cast %87 : vector<1x64xf32> to vector<64xf32>
    %89 = vector.extract_strided_slice %3 {offsets = [1, 0], sizes = [1, 64], strides = [1, 1]} : vector<3x64xf32> to vector<1x64xf32>
    %90 = vector.shape_cast %89 : vector<1x64xf32> to vector<64xf32>
    %cst_34 = arith.constant dense<0.000000e+00> : vector<8xf32>
    %91 = vector.multi_reduction <add>, %86, %cst_34 [1] : vector<8x64xf32> to vector<8xf32>
    %92 = vector.shape_cast %91 : vector<8xf32> to vector<8x1xf32>
    %cst_35 = arith.constant 6.400000e+01 : f32
    %93 = vector.broadcast %cst_35 : f32 to vector<8x1xf32>
    %94 = arith.divf %92, %93 : vector<8x1xf32>
    %95 = vector.broadcast %94 : vector<8x1xf32> to vector<8x64xf32>
    %96 = arith.subf %86, %95 : vector<8x64xf32>
    %97 = arith.mulf %96, %96 : vector<8x64xf32>
    %cst_36 = arith.constant dense<0.000000e+00> : vector<8xf32>
    %98 = vector.multi_reduction <add>, %97, %cst_36 [1] : vector<8x64xf32> to vector<8xf32>
    %99 = vector.shape_cast %98 : vector<8xf32> to vector<8x1xf32>
    %cst_37 = arith.constant 6.400000e+01 : f32
    %100 = vector.broadcast %cst_37 : f32 to vector<8x1xf32>
    %101 = arith.divf %99, %100 : vector<8x1xf32>
    %102 = vector.broadcast %94 : vector<8x1xf32> to vector<8x64xf32>
    %103 = arith.subf %86, %102 : vector<8x64xf32>
    %cst_38 = arith.constant 9.99999974E-6 : f32
    %104 = vector.broadcast %cst_38 : f32 to vector<8x1xf32>
    %105 = arith.addf %101, %104 : vector<8x1xf32>
    %106 = math.rsqrt %105 : vector<8x1xf32>
    %107 = vector.broadcast %106 : vector<8x1xf32> to vector<8x64xf32>
    %108 = arith.mulf %103, %107 : vector<8x64xf32>
    %109 = vector.shape_cast %88 : vector<64xf32> to vector<1x64xf32>
    %110 = vector.broadcast %109 : vector<1x64xf32> to vector<8x64xf32>
    %111 = arith.mulf %108, %110 : vector<8x64xf32>
    %112 = vector.shape_cast %90 : vector<64xf32> to vector<1x64xf32>
    %113 = vector.broadcast %112 : vector<1x64xf32> to vector<8x64xf32>
    %114 = arith.addf %111, %113 : vector<8x64xf32>
    %115 = arith.truncf %114 : vector<8x64xf32> to vector<8x64xbf16>
    %c0_39 = arith.constant 0 : index
    %c0_40 = arith.constant 0 : index
    %116 = vector.load %arg13[%c0_39, %c0_40] : memref<64x64xbf16, #tpu.memory_space<vmem>>, vector<64x64xbf16>
    %cst_41 = arith.constant dense<0.000000e+00> : vector<8x64xf32>
    %117 = tpu.matmul %115, %116, %cst_41 {dimension_numbers = #tpu.dot_dimension_numbers<[1], [0], [0], [1], [0, 0, 1, 1], [], []>} : vector<8x64xbf16>, vector<64x64xbf16>, vector<8x64xf32> -> vector<8x64xf32>
    %c0_42 = arith.constant 0 : index
    %c0_43 = arith.constant 0 : index
    %118 = vector.load %arg14[%c0_42, %c0_43] : memref<1x64xf32, #tpu.memory_space<vmem>>, vector<1x64xf32>
    %119 = vector.broadcast %118 : vector<1x64xf32> to vector<8x64xf32>
    %120 = arith.addf %117, %119 : vector<8x64xf32>
    %c0_44 = arith.constant 0 : index
    %c0_45 = arith.constant 0 : index
    %c0_46 = arith.constant 0 : index
    %121 = vector.load %arg4[%c0_44, %c0_45, %c0_46] : memref<1x16x64xf32, #tpu.memory_space<vmem>>, vector<1x16x64xf32>
    %122 = vector.shape_cast %121 : vector<1x16x64xf32> to vector<16x64xf32>
    %123 = arith.truncf %122 : vector<16x64xf32> to vector<16x64xbf16>
    %c0_47 = arith.constant 0 : index
    %c0_48 = arith.constant 0 : index
    %124 = vector.load %arg15[%c0_47, %c0_48] : memref<64x128xbf16, #tpu.memory_space<vmem>>, vector<64x128xbf16>
    %cst_49 = arith.constant dense<0.000000e+00> : vector<16x128xf32>
    %125 = tpu.matmul %123, %124, %cst_49 {dimension_numbers = #tpu.dot_dimension_numbers<[1], [0], [0], [1], [0, 0, 1, 1], [], []>} : vector<16x64xbf16>, vector<64x128xbf16>, vector<16x128xf32> -> vector<16x128xf32>
    %c0_50 = arith.constant 0 : index
    %c0_51 = arith.constant 0 : index
    %126 = vector.load %arg16[%c0_50, %c0_51] : memref<1x128xf32, #tpu.memory_space<vmem>>, vector<1x128xf32>
    %127 = vector.broadcast %126 : vector<1x128xf32> to vector<16x128xf32>
    %128 = arith.addf %125, %127 : vector<16x128xf32>
    %129 = vector.extract_strided_slice %128 {offsets = [0, 0], sizes = [16, 64], strides = [1, 1]} : vector<16x128xf32> to vector<16x64xf32>
    %130 = vector.extract_strided_slice %128 {offsets = [0, 64], sizes = [16, 64], strides = [1, 1]} : vector<16x128xf32> to vector<16x64xf32>
    %131 = arith.truncf %120 : vector<8x64xf32> to vector<8x64xbf16>
    %132 = arith.truncf %129 : vector<16x64xf32> to vector<16x64xbf16>
    "tpu.trace_start"() <{level = 10 : i32, message = "qd,kd->qk"}> : () -> ()
    %cst_52 = arith.constant dense<0.000000e+00> : vector<8x16xf32>
    %133 = tpu.matmul %131, %132, %cst_52 {dimension_numbers = #tpu.dot_dimension_numbers<[1], [1], [0], [0], [0, 0, 1, 0], [], []>} : vector<8x64xbf16>, vector<16x64xbf16>, vector<8x16xf32> -> vector<8x16xf32>
    "tpu.trace_stop"() : () -> ()
    %cst_53 = arith.constant 1.250000e-01 : f32
    %134 = vector.broadcast %cst_53 : f32 to vector<8x16xf32>
    %135 = arith.mulf %133, %134 : vector<8x16xf32>
    %cst_54 = arith.constant -3.40282347E+38 : f32
    %136 = vector.broadcast %cst_54 : f32 to vector<8x16xf32>
    %137 = arith.select %22, %135, %136 : vector<8x16xi1>, vector<8x16xf32>
    %cst_55 = arith.constant dense<0xFF800000> : vector<8xf32>
    %138 = vector.multi_reduction <maximumf>, %137, %cst_55 [1] : vector<8x16xf32> to vector<8xf32>
    %139 = vector.shape_cast %138 : vector<8xf32> to vector<8x1xf32>
    %140 = vector.broadcast %139 : vector<8x1xf32> to vector<8x16xf32>
    %141 = arith.subf %137, %140 : vector<8x16xf32>
    %142 = math.exp %141 : vector<8x16xf32>
    %cst_56 = arith.constant dense<0.000000e+00> : vector<8xf32>
    %143 = vector.multi_reduction <add>, %142, %cst_56 [1] : vector<8x16xf32> to vector<8xf32>
    %144 = vector.shape_cast %143 : vector<8xf32> to vector<8x1xf32>
    %145 = tpu.reciprocal %144 {approx = true} : vector<8x1xf32> -> vector<8x1xf32>
    %146 = vector.broadcast %145 : vector<8x1xf32> to vector<8x16xf32>
    %147 = arith.mulf %142, %146 : vector<8x16xf32>
    %148 = arith.truncf %147 : vector<8x16xf32> to vector<8x16xbf16>
    %149 = arith.truncf %130 : vector<16x64xf32> to vector<16x64xbf16>
    %cst_57 = arith.constant dense<0.000000e+00> : vector<8x64xf32>
    %150 = tpu.matmul %148, %149, %cst_57 {dimension_numbers = #tpu.dot_dimension_numbers<[1], [0], [0], [1], [0, 0, 1, 1], [], []>} : vector<8x16xbf16>, vector<16x64xbf16>, vector<8x64xf32> -> vector<8x64xf32>
    %151 = arith.truncf %150 : vector<8x64xf32> to vector<8x64xbf16>
    %c0_58 = arith.constant 0 : index
    %c0_59 = arith.constant 0 : index
    %152 = vector.load %arg17[%c0_58, %c0_59] : memref<64x64xbf16, #tpu.memory_space<vmem>>, vector<64x64xbf16>
    %cst_60 = arith.constant dense<0.000000e+00> : vector<8x64xf32>
    %153 = tpu.matmul %151, %152, %cst_60 {dimension_numbers = #tpu.dot_dimension_numbers<[1], [0], [0], [1], [0, 0, 1, 1], [], []>} : vector<8x64xbf16>, vector<64x64xbf16>, vector<8x64xf32> -> vector<8x64xf32>
    %154 = arith.addf %86, %153 : vector<8x64xf32>
    %c0_61 = arith.constant 0 : index
    %c0_62 = arith.constant 0 : index
    %155 = vector.load %arg18[%c0_61, %c0_62] : memref<1x64xf32, #tpu.memory_space<vmem>>, vector<1x64xf32>
    %156 = vector.broadcast %155 : vector<1x64xf32> to vector<8x64xf32>
    %157 = arith.addf %154, %156 : vector<8x64xf32>
    %158 = vector.extract_strided_slice %2 {offsets = [2, 0], sizes = [1, 64], strides = [1, 1]} : vector<3x64xf32> to vector<1x64xf32>
    %159 = vector.shape_cast %158 : vector<1x64xf32> to vector<64xf32>
    %160 = vector.extract_strided_slice %3 {offsets = [2, 0], sizes = [1, 64], strides = [1, 1]} : vector<3x64xf32> to vector<1x64xf32>
    %161 = vector.shape_cast %160 : vector<1x64xf32> to vector<64xf32>
    %cst_63 = arith.constant dense<0.000000e+00> : vector<8xf32>
    %162 = vector.multi_reduction <add>, %157, %cst_63 [1] : vector<8x64xf32> to vector<8xf32>
    %163 = vector.shape_cast %162 : vector<8xf32> to vector<8x1xf32>
    %cst_64 = arith.constant 6.400000e+01 : f32
    %164 = vector.broadcast %cst_64 : f32 to vector<8x1xf32>
    %165 = arith.divf %163, %164 : vector<8x1xf32>
    %166 = vector.broadcast %165 : vector<8x1xf32> to vector<8x64xf32>
    %167 = arith.subf %157, %166 : vector<8x64xf32>
    %168 = arith.mulf %167, %167 : vector<8x64xf32>
    %cst_65 = arith.constant dense<0.000000e+00> : vector<8xf32>
    %169 = vector.multi_reduction <add>, %168, %cst_65 [1] : vector<8x64xf32> to vector<8xf32>
    %170 = vector.shape_cast %169 : vector<8xf32> to vector<8x1xf32>
    %cst_66 = arith.constant 6.400000e+01 : f32
    %171 = vector.broadcast %cst_66 : f32 to vector<8x1xf32>
    %172 = arith.divf %170, %171 : vector<8x1xf32>
    %173 = vector.broadcast %165 : vector<8x1xf32> to vector<8x64xf32>
    %174 = arith.subf %157, %173 : vector<8x64xf32>
    %cst_67 = arith.constant 9.99999974E-6 : f32
    %175 = vector.broadcast %cst_67 : f32 to vector<8x1xf32>
    %176 = arith.addf %172, %175 : vector<8x1xf32>
    %177 = math.rsqrt %176 : vector<8x1xf32>
    %178 = vector.broadcast %177 : vector<8x1xf32> to vector<8x64xf32>
    %179 = arith.mulf %174, %178 : vector<8x64xf32>
    %180 = vector.shape_cast %159 : vector<64xf32> to vector<1x64xf32>
    %181 = vector.broadcast %180 : vector<1x64xf32> to vector<8x64xf32>
    %182 = arith.mulf %179, %181 : vector<8x64xf32>
    %183 = vector.shape_cast %161 : vector<64xf32> to vector<1x64xf32>
    %184 = vector.broadcast %183 : vector<1x64xf32> to vector<8x64xf32>
    %185 = arith.addf %182, %184 : vector<8x64xf32>
    %186 = arith.truncf %185 : vector<8x64xf32> to vector<8x64xbf16>
    %c0_68 = arith.constant 0 : index
    %c0_69 = arith.constant 0 : index
    %187 = vector.load %arg19[%c0_68, %c0_69] : memref<64x256xbf16, #tpu.memory_space<vmem>>, vector<64x256xbf16>
    %cst_70 = arith.constant dense<0.000000e+00> : vector<8x256xf32>
    %188 = tpu.matmul %186, %187, %cst_70 {dimension_numbers = #tpu.dot_dimension_numbers<[1], [0], [0], [1], [0, 0, 1, 1], [], []>} : vector<8x64xbf16>, vector<64x256xbf16>, vector<8x256xf32> -> vector<8x256xf32>
    %c0_71 = arith.constant 0 : index
    %c0_72 = arith.constant 0 : index
    %189 = vector.load %arg20[%c0_71, %c0_72] : memref<1x256xf32, #tpu.memory_space<vmem>>, vector<1x256xf32>
    %190 = vector.broadcast %189 : vector<1x256xf32> to vector<8x256xf32>
    %191 = arith.addf %188, %190 : vector<8x256xf32>
    %cst_73 = arith.constant 0.000000e+00 : f32
    %192 = vector.broadcast %cst_73 : f32 to vector<8x256xf32>
    %193 = arith.maximumf %191, %192 : vector<8x256xf32>
    %194 = arith.truncf %193 : vector<8x256xf32> to vector<8x256xbf16>
    %c0_74 = arith.constant 0 : index
    %c0_75 = arith.constant 0 : index
    %195 = vector.load %arg21[%c0_74, %c0_75] : memref<256x64xbf16, #tpu.memory_space<vmem>>, vector<256x64xbf16>
    %cst_76 = arith.constant dense<0.000000e+00> : vector<8x64xf32>
    %196 = tpu.matmul %194, %195, %cst_76 {dimension_numbers = #tpu.dot_dimension_numbers<[1], [0], [0], [1], [0, 0, 1, 1], [], []>} : vector<8x256xbf16>, vector<256x64xbf16>, vector<8x64xf32> -> vector<8x64xf32>
    %197 = arith.addf %157, %196 : vector<8x64xf32>
    %c0_77 = arith.constant 0 : index
    %c0_78 = arith.constant 0 : index
    %198 = vector.load %arg22[%c0_77, %c0_78] : memref<1x64xf32, #tpu.memory_space<vmem>>, vector<1x64xf32>
    %199 = vector.broadcast %198 : vector<1x64xf32> to vector<8x64xf32>
    %200 = arith.addf %197, %199 : vector<8x64xf32>
    %c0_79 = arith.constant 0 : index
    %c0_80 = arith.constant 0 : index
    %c0_81 = arith.constant 0 : index
    %201 = vector.load %arg23[%c0_79, %c0_80, %c0_81] : memref<1x8x64xf32, #tpu.memory_space<vmem>>, vector<1x8x64xf32>
    %202 = vector.shape_cast %201 : vector<1x8x64xf32> to vector<8x64xf32>
    %203 = vector.shape_cast %200 : vector<8x64xf32> to vector<1x8x64xf32>
    tpu.vector_store %arg23[%c0_79, %c0_80, %c0_81], %203 {strides = array<i32>} : memref<1x8x64xf32, #tpu.memory_space<vmem>>, vector<1x8x64xf32>,
    return
  }
  func.func @transform_0(%arg0: i32, %arg1: i32) -> (i32, i32, i32) {
    %c0_i32 = arith.constant 0 : i32
    %c0_i32_0 = arith.constant 0 : i32
    return %arg0, %arg1, %c0_i32 : i32, i32, i32
  }
  func.func @transform_1(%arg0: i32, %arg1: i32) -> (i32, i32, i32) {
    %c0_i32 = arith.constant 0 : i32
    %c0_i32_0 = arith.constant 0 : i32
    %c0_i32_1 = arith.constant 0 : i32
    return %arg0, %c0_i32, %c0_i32_0 : i32, i32, i32
  }
  func.func @transform_2(%arg0: i32, %arg1: i32) -> (i32, i32, i32) {
    %c0_i32 = arith.constant 0 : i32
    %c0_i32_0 = arith.constant 0 : i32
    %c0_i32_1 = arith.constant 0 : i32
    return %arg0, %c0_i32, %c0_i32_0 : i32, i32, i32
  }
  func.func @transform_3(%arg0: i32, %arg1: i32) -> (i32, i32, i32) {
    %c0_i32 = arith.constant 0 : i32
    %c0_i32_0 = arith.constant 0 : i32
    %c0_i32_1 = arith.constant 0 : i32
    return %arg0, %c0_i32, %c0_i32_0 : i32, i32, i32
  }
  func.func @transform_4(%arg0: i32, %arg1: i32) -> (i32, i32, i32) {
    %c0_i32 = arith.constant 0 : i32
    %c0_i32_0 = arith.constant 0 : i32
    %c0_i32_1 = arith.constant 0 : i32
    return %arg0, %c0_i32, %c0_i32_0 : i32, i32, i32
  }
  func.func @transform_5(%arg0: i32, %arg1: i32) -> (i32, i32) {
    %c0_i32 = arith.constant 0 : i32
    %c0_i32_0 = arith.constant 0 : i32
    %c0_i32_1 = arith.constant 0 : i32
    return %c0_i32, %c0_i32_0 : i32, i32
  }
  func.func @transform_6(%arg0: i32, %arg1: i32) -> (i32, i32) {
    %c0_i32 = arith.constant 0 : i32
    %c0_i32_0 = arith.constant 0 : i32
    %c0_i32_1 = arith.constant 0 : i32
    return %c0_i32, %c0_i32_0 : i32, i32
  }
  func.func @transform_7(%arg0: i32, %arg1: i32) -> (i32, i32) {
    %c0_i32 = arith.constant 0 : i32
    %c0_i32_0 = arith.constant 0 : i32
    %c0_i32_1 = arith.constant 0 : i32
    return %c0_i32, %c0_i32_0 : i32, i32
  }
  func.func @transform_8(%arg0: i32, %arg1: i32) -> (i32, i32) {
    %c0_i32 = arith.constant 0 : i32
    %c0_i32_0 = arith.constant 0 : i32
    %c0_i32_1 = arith.constant 0 : i32
    return %c0_i32, %c0_i32_0 : i32, i32
  }
  func.func @transform_9(%arg0: i32, %arg1: i32) -> (i32, i32) {
    %c0_i32 = arith.constant 0 : i32
    %c0_i32_0 = arith.constant 0 : i32
    %c0_i32_1 = arith.constant 0 : i32
    return %c0_i32, %c0_i32_0 : i32, i32
  }
  func.func @transform_10(%arg0: i32, %arg1: i32) -> (i32, i32) {
    %c0_i32 = arith.constant 0 : i32
    %c0_i32_0 = arith.constant 0 : i32
    %c0_i32_1 = arith.constant 0 : i32
    return %c0_i32, %c0_i32_0 : i32, i32
  }
  func.func @transform_11(%arg0: i32, %arg1: i32) -> (i32, i32) {
    %c0_i32 = arith.constant 0 : i32
    %c0_i32_0 = arith.constant 0 : i32
    %c0_i32_1 = arith.constant 0 : i32
    return %c0_i32, %c0_i32_0 : i32, i32
  }
  func.func @transform_12(%arg0: i32, %arg1: i32) -> (i32, i32) {
    %c0_i32 = arith.constant 0 : i32
    %c0_i32_0 = arith.constant 0 : i32
    %c0_i32_1 = arith.constant 0 : i32
    return %c0_i32, %c0_i32_0 : i32, i32
  }
  func.func @transform_13(%arg0: i32, %arg1: i32) -> (i32, i32) {
    %c0_i32 = arith.constant 0 : i32
    %c0_i32_0 = arith.constant 0 : i32
    %c0_i32_1 = arith.constant 0 : i32
    return %c0_i32, %c0_i32_0 : i32, i32
  }
  func.func @transform_14(%arg0: i32, %arg1: i32) -> (i32, i32) {
    %c0_i32 = arith.constant 0 : i32
    %c0_i32_0 = arith.constant 0 : i32
    %c0_i32_1 = arith.constant 0 : i32
    return %c0_i32, %c0_i32_0 : i32, i32
  }
  func.func @transform_15(%arg0: i32, %arg1: i32) -> (i32, i32) {
    %c0_i32 = arith.constant 0 : i32
    %c0_i32_0 = arith.constant 0 : i32
    %c0_i32_1 = arith.constant 0 : i32
    return %c0_i32, %c0_i32_0 : i32, i32
  }
  func.func @transform_16(%arg0: i32, %arg1: i32) -> (i32, i32) {
    %c0_i32 = arith.constant 0 : i32
    %c0_i32_0 = arith.constant 0 : i32
    %c0_i32_1 = arith.constant 0 : i32
    return %c0_i32, %c0_i32_0 : i32, i32
  }
  func.func @transform_17(%arg0: i32, %arg1: i32) -> (i32, i32) {
    %c0_i32 = arith.constant 0 : i32
    %c0_i32_0 = arith.constant 0 : i32
    %c0_i32_1 = arith.constant 0 : i32
    return %c0_i32, %c0_i32_0 : i32, i32
  }
  func.func @transform_18(%arg0: i32, %arg1: i32) -> (i32, i32) {
    %c0_i32 = arith.constant 0 : i32
    %c0_i32_0 = arith.constant 0 : i32
    %c0_i32_1 = arith.constant 0 : i32
    return %c0_i32, %c0_i32_0 : i32, i32
  }
  func.func @transform_19(%arg0: i32, %arg1: i32) -> (i32, i32) {
    %c0_i32 = arith.constant 0 : i32
    %c0_i32_0 = arith.constant 0 : i32
    %c0_i32_1 = arith.constant 0 : i32
    return %c0_i32, %c0_i32_0 : i32, i32
  }
  func.func @transform_20(%arg0: i32, %arg1: i32) -> (i32, i32) {
    %c0_i32 = arith.constant 0 : i32
    %c0_i32_0 = arith.constant 0 : i32
    %c0_i32_1 = arith.constant 0 : i32
    return %c0_i32, %c0_i32_0 : i32, i32
  }
  func.func @transform_21(%arg0: i32, %arg1: i32) -> (i32, i32, i32) {
    %c0_i32 = arith.constant 0 : i32
    %c0_i32_0 = arith.constant 0 : i32
    return %arg0, %arg1, %c0_i32 : i32, i32, i32
  }
}

</mosaic_0001>

<llo_original>
// kernel: tpu_custom_call.1
$region0: #{tpu_custom_call.1}
  #allocation0 [shape = 'u32[]', space=smem, size = 0x4, offset = 0x4, fixed_abs, tag = 'smem constant byte address 0x4 - core index']
  #allocation1 [shape = 'u32[144,128]{1,0:T(1,128)}', space=vmem, size = 0x12000, scoped, tag = 'internal scratch']
  %s0 = inlined_call_operand.hbm [shape: f32[2,8,64], index: 0, kind: input, shape index: {}]
  %s1 = inlined_call_operand.hbm [shape: f32[2,8,64], index: 1, kind: input, shape index: {}]
  %s2 = inlined_call_operand.vmem [shape: f32[2,16,64], index: 2, kind: input, shape index: {}]
  %s3 = inlined_call_operand.vmem [shape: f32[2,1,8], index: 3, kind: input, shape index: {}]
  %s4 = inlined_call_operand.hbm [shape: f32[2,1,16], index: 4, kind: input, shape index: {}]
  %s5 = inlined_call_operand.vmem [shape: f32[3,64], index: 5, kind: input, shape index: {}]
  %s6 = inlined_call_operand.vmem [shape: f32[3,64], index: 6, kind: input, shape index: {}]
  %s7 = inlined_call_operand.vmem [shape: bf16[64,192], index: 7, kind: input, shape index: {}]
  %s8 = inlined_call_operand.vmem [shape: f32[1,192], index: 8, kind: input, shape index: {}]
  %s9 = inlined_call_operand.vmem [shape: bf16[64,64], index: 9, kind: input, shape index: {}]
  %s10 = inlined_call_operand.vmem [shape: f32[1,64], index: 10, kind: input, shape index: {}]
  %s11 = inlined_call_operand.hbm [shape: bf16[64,64], index: 11, kind: input, shape index: {}]
  %s12 = inlined_call_operand.vmem [shape: f32[1,64], index: 12, kind: input, shape index: {}]
  %s13 = inlined_call_operand.hbm [shape: bf16[64,128], index: 13, kind: input, shape index: {}]
  %s14 = inlined_call_operand.vmem [shape: f32[1,128], index: 14, kind: input, shape index: {}]
  %s15 = inlined_call_operand.hbm [shape: bf16[64,64], index: 15, kind: input, shape index: {}]
  %s16 = inlined_call_operand.vmem [shape: f32[1,64], index: 16, kind: input, shape index: {}]
  %s17 = inlined_call_operand.vmem [shape: bf16[64,256], index: 17, kind: input, shape index: {}]
  %s18 = inlined_call_operand.vmem [shape: f32[1,256], index: 18, kind: input, shape index: {}]
  %s19 = inlined_call_operand.vmem [shape: bf16[256,64], index: 19, kind: input, shape index: {}]
  %s20 = inlined_call_operand.vmem [shape: f32[1,64], index: 20, kind: input, shape index: {}]
  %s21 = inlined_call_operand.hbm [shape: f32[2,8,64], index: 21, kind: output, shape index: {}]
  %s22 = sld [smem:[#allocation0]]
  $region141: #{tpu_custom_call.1} parent=0
    _
  %s24 = ssub.s32 1, %s22
  %s25 = scalar_select 0, %s24, %s22
  $region1: #{tpu_custom_call.1} parent=0
    #allocation2 [shape = 'u8[8192]{0}', space=vmem, size = 0x2000, scoped, tag = 'input window, operand 0']
    #allocation3 [shape = 's32[2]{0}', space=sflag, size = 0x8, scoped, tag = 'scoped memory for tpu_custom_call.1']
    #allocation4 [shape = 's32[2]{0}', space=sflag, size = 0x8, scoped, tag = 'scoped memory for tpu_custom_call.1']
    #allocation5 [shape = 'u8[8192]{0}', space=vmem, size = 0x2000, scoped, tag = 'input window, operand 1']
    #allocation6 [shape = 's32[2]{0}', space=sflag, size = 0x8, scoped, tag = 'scoped memory for tpu_custom_call.1']
    #allocation7 [shape = 'u8[1024]{0}', space=vmem, size = 0x400, scoped, tag = 'input window, operand 4']
    #allocation8 [shape = 'u8[16384]{0}', space=vmem, size = 0x4000, scoped, tag = 'input window, operand 11, single buffered']
    #allocation9 [shape = 's32[1]{0}', space=sflag, size = 0x4, scoped, tag = 'scoped memory for tpu_custom_call.1']
    #allocation10 [shape = 'u8[16384]{0}', space=vmem, size = 0x4000, scoped, tag = 'input window, operand 13, single buffered']
    #allocation11 [shape = 'u8[16384]{0}', space=vmem, size = 0x4000, scoped, tag = 'input window, operand 15, single buffered']
    #allocation12 [shape = 's32[1]{0}', space=sflag, size = 0x4, scoped, tag = 'scoped memory for tpu_custom_call.1']
    #allocation13 [shape = 'u8[8192]{0}', space=vmem, size = 0x2000, scoped, tag = 'output window, operand 0']
    %26 = vsyncpa [#allocation3], 0
    %s27 = scalar_lea.sflag [#allocation3], 1
    %28 = vsyncpa %s27, 0
    %29 = vsyncpa [#allocation6], 0
    %s30 = scalar_lea.sflag [#allocation6], 1
    %31 = vsyncpa %s30, 0
    %32 = vsyncpa [#allocation9], 0
    %33 = vsyncpa [#allocation12], 0
    %34 = vsyncpa [#allocation4], 0
    %s35 = scalar_lea.sflag [#allocation4], 1
    %36 = vsyncpa %s35, 0
    loop: start=0, step=1, limit=4
    $region2: #{tpu_custom_call.1} parent=1 // loop_pre_header
      _
    $region3: #{tpu_custom_call.1} parent=1 // loop_header
      %s38 = sphi 0, %s42
      %p39 = scmp.ge.s32.totalorder %s38, 4
      %s45 = sphi 0, %s57
      %s46 = sphi 0, %s53
      %s47 = sphi 0, %s45
      %s48 = sphi 0, %s46
      %s49 = sphi 0, %s47
      %s50 = sphi 0, %s48
      %s62 = sphi 0, %s64
      %s65 = sphi 0, %s62
      %s66 = sphi 0, %s65
      %s82 = sphi 0, %s66
      %s88 = sphi 0, %s90
      %s91 = sphi 0, %s88
      %s92 = sphi 0, %s91
      %s108 = sphi 0, %s92
      %s114 = sphi 0, %s116
      %s117 = sphi 0, %s114
      %s118 = sphi 0, %s117
      %s134 = sphi 0, %s118
      %s140 = sphi 0, %s142
      %s143 = sphi 0, %s140
      %s144 = sphi 0, %s143
      %s160 = sphi 0, %s144
      %s166 = sphi 0, %s168
      %s169 = sphi 0, %s166
      %s170 = sphi 0, %s169
      %s186 = sphi 0, %s170
      %s190 = sphi 0, %s190
      %s192 = sphi 0, %s190
      %s193 = sphi 0, %s192
      %s207 = sphi 0, %s193
      %s211 = sphi 0, %s211
      %s213 = sphi 0, %s211
      %s214 = sphi 0, %s213
      %s228 = sphi 0, %s214
      %s232 = sphi 0, %s232
      %s234 = sphi 0, %s232
      %s235 = sphi 0, %s234
      %s249 = sphi 0, %s235
      %s253 = sphi 0, %s253
      %s255 = sphi 0, %s253
      %s256 = sphi 0, %s255
      %s270 = sphi 0, %s256
      %s274 = sphi 0, %s274
      %s276 = sphi 0, %s274
      %s277 = sphi 0, %s276
      %s291 = sphi 0, %s277
      %s295 = sphi 0, %s295
      %s297 = sphi 0, %s295
      %s298 = sphi 0, %s297
      %s312 = sphi 0, %s298
      %s316 = sphi 0, %s316
      %s318 = sphi 0, %s316
      %s319 = sphi 0, %s318
      %s333 = sphi 0, %s319
      %s337 = sphi 0, %s337
      %s339 = sphi 0, %s337
      %s340 = sphi 0, %s339
      %s354 = sphi 0, %s340
      %s358 = sphi 0, %s358
      %s360 = sphi 0, %s358
      %s361 = sphi 0, %s360
      %s375 = sphi 0, %s361
      %s379 = sphi 0, %s379
      %s381 = sphi 0, %s379
      %s382 = sphi 0, %s381
      %s396 = sphi 0, %s382
      %s400 = sphi 0, %s400
      %s402 = sphi 0, %s400
      %s403 = sphi 0, %s402
      %s417 = sphi 0, %s403
      %s421 = sphi 0, %s421
      %s423 = sphi 0, %s421
      %s424 = sphi 0, %s423
      %s438 = sphi 0, %s424
      %s442 = sphi 0, %s442
      %s444 = sphi 0, %s442
      %s445 = sphi 0, %s444
      %s459 = sphi 0, %s445
      %s463 = sphi 0, %s463
      %s465 = sphi 0, %s463
      %s466 = sphi 0, %s465
      %s480 = sphi 0, %s466
      %s484 = sphi 0, %s484
      %s486 = sphi 0, %s484
      %s487 = sphi 0, %s486
      %s501 = sphi 0, %s487
      %s505 = sphi 0, %s505
      %s507 = sphi 0, %s505
      %s508 = sphi 0, %s507
      %s522 = sphi 0, %s508
      %s530 = sphi 0, %s532
      %s533 = sphi 0, %s530
      %s534 = sphi 0, %s533
      %s550 = sphi 0, %s534
    $region4: #{tpu_custom_call.1} parent=1 // loop_header_branch
      %41 = sbr.rel (%p39) target = $region8
    $region5: #{tpu_custom_call.1} parent=1 // loop_body
      %s43 = ssub.s32 %s38, 1
      %s44 = ssub.s32 %s38, 2
      %s51 = sadd.s32 1, %s46
      %p52 = scmp.ge.s32.totalorder %s51, 1
      %s53 = scalar_select %p52, 0, %s51
      %s54 = sadd.s32 1, %s45
      %s55 = scalar_select %p52, %s54, %s45
      %p56 = scmp.ge.s32.totalorder %s55, 2
      %s57 = scalar_select %p56, 0, %s55
      %s58 = ssub.s32 %s45, %s57
      %s59 = ssub.s32 %s46, %s53
      %s60 = sor.u32 %s58, %s59
      %p61 = scmp.eq.s32.totalorder %s60, 0
      %s63 = sadd.s32 %s62, 1
      %s64 = scalar_select %p61, %s62, %s63
      %p67 = pneg %p61
      %p68 = scmp.eq.s32.totalorder %s38, 1
      %p69 = por %p67, %p68
      %p70 = scmp.ne.s32.totalorder %s62, %s65
      %p71 = scmp.eq.s32.totalorder %s38, 0
      %p72 = por %p70, %p71
      %p73 = scmp.ne.s32.totalorder %s62, %s65
      %p74 = scmp.eq.s32.totalorder %s43, 1
      %p75 = por %p73, %p74
      %p76 = scmp.ne.s32.totalorder %s65, %s66
      %p77 = scmp.eq.s32.totalorder %s43, 0
      %p78 = por %p76, %p77
      %p79 = scmp.ne.s32.totalorder %s65, %s66
      %p80 = scmp.eq.s32.totalorder %s44, 1
      %p81 = por %p79, %p80
      %p83 = scmp.ne.s32.totalorder %s66, %s82
      %p84 = scmp.eq.s32.totalorder %s44, 0
      %p85 = por %p83, %p84
      %s86 = ssub.s32 %s45, %s57
      %p87 = scmp.eq.s32.totalorder %s86, 0
      %s89 = sadd.s32 %s88, 1
      %s90 = scalar_select %p87, %s88, %s89
      %p93 = pneg %p87
      %p94 = scmp.eq.s32.totalorder %s38, 1
      %p95 = por %p93, %p94
      %p96 = scmp.ne.s32.totalorder %s88, %s91
      %p97 = scmp.eq.s32.totalorder %s38, 0
      %p98 = por %p96, %p97
      %p99 = scmp.ne.s32.totalorder %s88, %s91
      %p100 = scmp.eq.s32.totalorder %s43, 1
      %p101 = por %p99, %p100
      %p102 = scmp.ne.s32.totalorder %s91, %s92
      %p103 = scmp.eq.s32.totalorder %s43, 0
      %p104 = por %p102, %p103
      %p105 = scmp.ne.s32.totalorder %s91, %s92
      %p106 = scmp.eq.s32.totalorder %s44, 1
      %p107 = por %p105, %p106
      %p109 = scmp.ne.s32.totalorder %s92, %s108
      %p110 = scmp.eq.s32.totalorder %s44, 0
      %p111 = por %p109, %p110
      %s112 = ssub.s32 %s45, %s57
      %p113 = scmp.eq.s32.totalorder %s112, 0
      %s115 = sadd.s32 %s114, 1
      %s116 = scalar_select %p113, %s114, %s115
      %p119 = pneg %p113
      %p120 = scmp.eq.s32.totalorder %s38, 1
      %p121 = por %p119, %p120
      %p122 = scmp.ne.s32.totalorder %s114, %s117
      %p123 = scmp.eq.s32.totalorder %s38, 0
      %p124 = por %p122, %p123
      %p125 = scmp.ne.s32.totalorder %s114, %s117
      %p126 = scmp.eq.s32.totalorder %s43, 1
      %p127 = por %p125, %p126
      %p128 = scmp.ne.s32.totalorder %s117, %s118
      %p129 = scmp.eq.s32.totalorder %s43, 0
      %p130 = por %p128, %p129
      %p131 = scmp.ne.s32.totalorder %s117, %s118
      %p132 = scmp.eq.s32.totalorder %s44, 1
      %p133 = por %p131, %p132
      %p135 = scmp.ne.s32.totalorder %s118, %s134
      %p136 = scmp.eq.s32.totalorder %s44, 0
      %p137 = por %p135, %p136
      %s138 = ssub.s32 %s45, %s57
      %p139 = scmp.eq.s32.totalorder %s138, 0
      %s141 = sadd.s32 %s140, 1
      %s142 = scalar_select %p139, %s140, %s141
      %p145 = pneg %p139
      %p146 = scmp.eq.s32.totalorder %s38, 1
      %p147 = por %p145, %p146
      %p148 = scmp.ne.s32.totalorder %s140, %s143
      %p149 = scmp.eq.s32.totalorder %s38, 0
      %p150 = por %p148, %p149
      %p151 = scmp.ne.s32.totalorder %s140, %s143
      %p152 = scmp.eq.s32.totalorder %s43, 1
      %p153 = por %p151, %p152
      %p154 = scmp.ne.s32.totalorder %s143, %s144
      %p155 = scmp.eq.s32.totalorder %s43, 0
      %p156 = por %p154, %p155
      %p157 = scmp.ne.s32.totalorder %s143, %s144
      %p158 = scmp.eq.s32.totalorder %s44, 1
      %p159 = por %p157, %p158
      %p161 = scmp.ne.s32.totalorder %s144, %s160
      %p162 = scmp.eq.s32.totalorder %s44, 0
      %p163 = por %p161, %p162
      %s164 = ssub.s32 %s45, %s57
      %p165 = scmp.eq.s32.totalorder %s164, 0
      %s167 = sadd.s32 %s166, 1
      %s168 = scalar_select %p165, %s166, %s167
      %p171 = pneg %p165
      %p172 = scmp.eq.s32.totalorder %s38, 1
      %p173 = por %p171, %p172
      %p174 = scmp.ne.s32.totalorder %s166, %s169
      %p175 = scmp.eq.s32.totalorder %s38, 0
      %p176 = por %p174, %p175
      %p177 = scmp.ne.s32.totalorder %s166, %s169
      %p178 = scmp.eq.s32.totalorder %s43, 1
      %p179 = por %p177, %p178
      %p180 = scmp.ne.s32.totalorder %s169, %s170
      %p181 = scmp.eq.s32.totalorder %s43, 0
      %p182 = por %p180, %p181
      %p183 = scmp.ne.s32.totalorder %s169, %s170
      %p184 = scmp.eq.s32.totalorder %s44, 1
      %p185 = por %p183, %p184
      %p187 = scmp.ne.s32.totalorder %s170, %s186
      %p188 = scmp.eq.s32.totalorder %s44, 0
      %p189 = por %p187, %p188
      %s191 = sadd.s32 %s190, 1
      %p194 = scmp.eq.s32.totalorder %s38, 1
      %p195 = scmp.ne.s32.totalorder %s190, %s192
      %p196 = scmp.eq.s32.totalorder %s38, 0
      %p197 = por %p195, %p196
      %p198 = scmp.ne.s32.totalorder %s190, %s192
      %p199 = scmp.eq.s32.totalorder %s43, 1
      %p200 = por %p198, %p199
      %p201 = scmp.ne.s32.totalorder %s192, %s193
      %p202 = scmp.eq.s32.totalorder %s43, 0
      %p203 = por %p201, %p202
      %p204 = scmp.ne.s32.totalorder %s192, %s193
      %p205 = scmp.eq.s32.totalorder %s44, 1
      %p206 = por %p204, %p205
      %p208 = scmp.ne.s32.totalorder %s193, %s207
      %p209 = scmp.eq.s32.totalorder %s44, 0
      %p210 = por %p208, %p209
      %s212 = sadd.s32 %s211, 1
      %p215 = scmp.eq.s32.totalorder %s38, 1
      %p216 = scmp.ne.s32.totalorder %s211, %s213
      %p217 = scmp.eq.s32.totalorder %s38, 0
      %p218 = por %p216, %p217
      %p219 = scmp.ne.s32.totalorder %s211, %s213
      %p220 = scmp.eq.s32.totalorder %s43, 1
      %p221 = por %p219, %p220
      %p222 = scmp.ne.s32.totalorder %s213, %s214
      %p223 = scmp.eq.s32.totalorder %s43, 0
      %p224 = por %p222, %p223
      %p225 = scmp.ne.s32.totalorder %s213, %s214
      %p226 = scmp.eq.s32.totalorder %s44, 1
      %p227 = por %p225, %p226
      %p229 = scmp.ne.s32.totalorder %s214, %s228
      %p230 = scmp.eq.s32.totalorder %s44, 0
      %p231 = por %p229, %p230
      %s233 = sadd.s32 %s232, 1
      %p236 = scmp.eq.s32.totalorder %s38, 1
      %p237 = scmp.ne.s32.totalorder %s232, %s234
      %p238 = scmp.eq.s32.totalorder %s38, 0
      %p239 = por %p237, %p238
      %p240 = scmp.ne.s32.totalorder %s232, %s234
      %p241 = scmp.eq.s32.totalorder %s43, 1
      %p242 = por %p240, %p241
      %p243 = scmp.ne.s32.totalorder %s234, %s235
      %p244 = scmp.eq.s32.totalorder %s43, 0
      %p245 = por %p243, %p244
      %p246 = scmp.ne.s32.totalorder %s234, %s235
      %p247 = scmp.eq.s32.totalorder %s44, 1
      %p248 = por %p246, %p247
      %p250 = scmp.ne.s32.totalorder %s235, %s249
      %p251 = scmp.eq.s32.totalorder %s44, 0
      %p252 = por %p250, %p251
      %s254 = sadd.s32 %s253, 1
      %p257 = scmp.eq.s32.totalorder %s38, 1
      %p258 = scmp.ne.s32.totalorder %s253, %s255
      %p259 = scmp.eq.s32.totalorder %s38, 0
      %p260 = por %p258, %p259
      %p261 = scmp.ne.s32.totalorder %s253, %s255
      %p262 = scmp.eq.s32.totalorder %s43, 1
      %p263 = por %p261, %p262
      %p264 = scmp.ne.s32.totalorder %s255, %s256
      %p265 = scmp.eq.s32.totalorder %s43, 0
      %p266 = por %p264, %p265
      %p267 = scmp.ne.s32.totalorder %s255, %s256
      %p268 = scmp.eq.s32.totalorder %s44, 1
      %p269 = por %p267, %p268
      %p271 = scmp.ne.s32.totalorder %s256, %s270
      %p272 = scmp.eq.s32.totalorder %s44, 0
      %p273 = por %p271, %p272
      %s275 = sadd.s32 %s274, 1
      %p278 = scmp.eq.s32.totalorder %s38, 1
      %p279 = scmp.ne.s32.totalorder %s274, %s276
      %p280 = scmp.eq.s32.totalorder %s38, 0
      %p281 = por %p279, %p280
      %p282 = scmp.ne.s32.totalorder %s274, %s276
      %p283 = scmp.eq.s32.totalorder %s43, 1
      %p284 = por %p282, %p283
      %p285 = scmp.ne.s32.totalorder %s276, %s277
      %p286 = scmp.eq.s32.totalorder %s43, 0
      %p287 = por %p285, %p286
      %p288 = scmp.ne.s32.totalorder %s276, %s277
      %p289 = scmp.eq.s32.totalorder %s44, 1
      %p290 = por %p288, %p289
      %p292 = scmp.ne.s32.totalorder %s277, %s291
      %p293 = scmp.eq.s32.totalorder %s44, 0
      %p294 = por %p292, %p293
      %s296 = sadd.s32 %s295, 1
      %p299 = scmp.eq.s32.totalorder %s38, 1
      %p300 = scmp.ne.s32.totalorder %s295, %s297
      %p301 = scmp.eq.s32.totalorder %s38, 0
      %p302 = por %p300, %p301
      %p303 = scmp.ne.s32.totalorder %s295, %s297
      %p304 = scmp.eq.s32.totalorder %s43, 1
      %p305 = por %p303, %p304
      %p306 = scmp.ne.s32.totalorder %s297, %s298
      %p307 = scmp.eq.s32.totalorder %s43, 0
      %p308 = por %p306, %p307
      %p309 = scmp.ne.s32.totalorder %s297, %s298
      %p310 = scmp.eq.s32.totalorder %s44, 1
      %p311 = por %p309, %p310
      %p313 = scmp.ne.s32.totalorder %s298, %s312
      %p314 = scmp.eq.s32.totalorder %s44, 0
      %p315 = por %p313, %p314
      %s317 = sadd.s32 %s316, 1
      %p320 = scmp.eq.s32.totalorder %s38, 1
      %p321 = scmp.ne.s32.totalorder %s316, %s318
      %p322 = scmp.eq.s32.totalorder %s38, 0
      %p323 = por %p321, %p322
      %p324 = scmp.ne.s32.totalorder %s316, %s318
      %p325 = scmp.eq.s32.totalorder %s43, 1
      %p326 = por %p324, %p325
      %p327 = scmp.ne.s32.totalorder %s318, %s319
      %p328 = scmp.eq.s32.totalorder %s43, 0
      %p329 = por %p327, %p328
      %p330 = scmp.ne.s32.totalorder %s318, %s319
      %p331 = scmp.eq.s32.totalorder %s44, 1
      %p332 = por %p330, %p331
      %p334 = scmp.ne.s32.totalorder %s319, %s333
      %p335 = scmp.eq.s32.totalorder %s44, 0
      %p336 = por %p334, %p335
      %s338 = sadd.s32 %s337, 1
      %p341 = scmp.eq.s32.totalorder %s38, 1
      %p342 = scmp.ne.s32.totalorder %s337, %s339
      %p343 = scmp.eq.s32.totalorder %s38, 0
      %p344 = por %p342, %p343
      %p345 = scmp.ne.s32.totalorder %s337, %s339
      %p346 = scmp.eq.s32.totalorder %s43, 1
      %p347 = por %p345, %p346
      %p348 = scmp.ne.s32.totalorder %s339, %s340
      %p349 = scmp.eq.s32.totalorder %s43, 0
      %p350 = por %p348, %p349
      %p351 = scmp.ne.s32.totalorder %s339, %s340
      %p352 = scmp.eq.s32.totalorder %s44, 1
      %p353 = por %p351, %p352
      %p355 = scmp.ne.s32.totalorder %s340, %s354
      %p356 = scmp.eq.s32.totalorder %s44, 0
      %p357 = por %p355, %p356
      %s359 = sadd.s32 %s358, 1
      %p362 = scmp.eq.s32.totalorder %s38, 1
      %p363 = scmp.ne.s32.totalorder %s358, %s360
      %p364 = scmp.eq.s32.totalorder %s38, 0
      %p365 = por %p363, %p364
      %p366 = scmp.ne.s32.totalorder %s358, %s360
      %p367 = scmp.eq.s32.totalorder %s43, 1
      %p368 = por %p366, %p367
      %p369 = scmp.ne.s32.totalorder %s360, %s361
      %p370 = scmp.eq.s32.totalorder %s43, 0
      %p371 = por %p369, %p370
      %p372 = scmp.ne.s32.totalorder %s360, %s361
      %p373 = scmp.eq.s32.totalorder %s44, 1
      %p374 = por %p372, %p373
      %p376 = scmp.ne.s32.totalorder %s361, %s375
      %p377 = scmp.eq.s32.totalorder %s44, 0
      %p378 = por %p376, %p377
      %s380 = sadd.s32 %s379, 1
      %p383 = scmp.eq.s32.totalorder %s38, 1
      %p384 = scmp.ne.s32.totalorder %s379, %s381
      %p385 = scmp.eq.s32.totalorder %s38, 0
      %p386 = por %p384, %p385
      %p387 = scmp.ne.s32.totalorder %s379, %s381
      %p388 = scmp.eq.s32.totalorder %s43, 1
      %p389 = por %p387, %p388
      %p390 = scmp.ne.s32.totalorder %s381, %s382
      %p391 = scmp.eq.s32.totalorder %s43, 0
      %p392 = por %p390, %p391
      %p393 = scmp.ne.s32.totalorder %s381, %s382
      %p394 = scmp.eq.s32.totalorder %s44, 1
      %p395 = por %p393, %p394
      %p397 = scmp.ne.s32.totalorder %s382, %s396
      %p398 = scmp.eq.s32.totalorder %s44, 0
      %p399 = por %p397, %p398
      %s401 = sadd.s32 %s400, 1
      %p404 = scmp.eq.s32.totalorder %s38, 1
      %p405 = scmp.ne.s32.totalorder %s400, %s402
      %p406 = scmp.eq.s32.totalorder %s38, 0
      %p407 = por %p405, %p406
      %p408 = scmp.ne.s32.totalorder %s400, %s402
      %p409 = scmp.eq.s32.totalorder %s43, 1
      %p410 = por %p408, %p409
      %p411 = scmp.ne.s32.totalorder %s402, %s403
      %p412 = scmp.eq.s32.totalorder %s43, 0
      %p413 = por %p411, %p412
      %p414 = scmp.ne.s32.totalorder %s402, %s403
      %p415 = scmp.eq.s32.totalorder %s44, 1
      %p416 = por %p414, %p415
      %p418 = scmp.ne.s32.totalorder %s403, %s417
      %p419 = scmp.eq.s32.totalorder %s44, 0
      %p420 = por %p418, %p419
      %s422 = sadd.s32 %s421, 1
      %p425 = scmp.eq.s32.totalorder %s38, 1
      %p426 = scmp.ne.s32.totalorder %s421, %s423
      %p427 = scmp.eq.s32.totalorder %s38, 0
      %p428 = por %p426, %p427
      %p429 = scmp.ne.s32.totalorder %s421, %s423
      %p430 = scmp.eq.s32.totalorder %s43, 1
      %p431 = por %p429, %p430
      %p432 = scmp.ne.s32.totalorder %s423, %s424
      %p433 = scmp.eq.s32.totalorder %s43, 0
      %p434 = por %p432, %p433
      %p435 = scmp.ne.s32.totalorder %s423, %s424
      %p436 = scmp.eq.s32.totalorder %s44, 1
      %p437 = por %p435, %p436
      %p439 = scmp.ne.s32.totalorder %s424, %s438
      %p440 = scmp.eq.s32.totalorder %s44, 0
      %p441 = por %p439, %p440
      %s443 = sadd.s32 %s442, 1
      %p446 = scmp.eq.s32.totalorder %s38, 1
      %p447 = scmp.ne.s32.totalorder %s442, %s444
      %p448 = scmp.eq.s32.totalorder %s38, 0
      %p449 = por %p447, %p448
      %p450 = scmp.ne.s32.totalorder %s442, %s444
      %p451 = scmp.eq.s32.totalorder %s43, 1
      %p452 = por %p450, %p451
      %p453 = scmp.ne.s32.totalorder %s444, %s445
      %p454 = scmp.eq.s32.totalorder %s43, 0
      %p455 = por %p453, %p454
      %p456 = scmp.ne.s32.totalorder %s444, %s445
      %p457 = scmp.eq.s32.totalorder %s44, 1
      %p458 = por %p456, %p457
      %p460 = scmp.ne.s32.totalorder %s445, %s459
      %p461 = scmp.eq.s32.totalorder %s44, 0
      %p462 = por %p460, %p461
      %s464 = sadd.s32 %s463, 1
      %p467 = scmp.eq.s32.totalorder %s38, 1
      %p468 = scmp.ne.s32.totalorder %s463, %s465
      %p469 = scmp.eq.s32.totalorder %s38, 0
      %p470 = por %p468, %p469
      %p471 = scmp.ne.s32.totalorder %s463, %s465
      %p472 = scmp.eq.s32.totalorder %s43, 1
      %p473 = por %p471, %p472
      %p474 = scmp.ne.s32.totalorder %s465, %s466
      %p475 = scmp.eq.s32.totalorder %s43, 0
      %p476 = por %p474, %p475
      %p477 = scmp.ne.s32.totalorder %s465, %s466
      %p478 = scmp.eq.s32.totalorder %s44, 1
      %p479 = por %p477, %p478
      %p481 = scmp.ne.s32.totalorder %s466, %s480
      %p482 = scmp.eq.s32.totalorder %s44, 0
      %p483 = por %p481, %p482
      %s485 = sadd.s32 %s484, 1
      %p488 = scmp.eq.s32.totalorder %s38, 1
      %p489 = scmp.ne.s32.totalorder %s484, %s486
      %p490 = scmp.eq.s32.totalorder %s38, 0
      %p491 = por %p489, %p490
      %p492 = scmp.ne.s32.totalorder %s484, %s486
      %p493 = scmp.eq.s32.totalorder %s43, 1
      %p494 = por %p492, %p493
      %p495 = scmp.ne.s32.totalorder %s486, %s487
      %p496 = scmp.eq.s32.totalorder %s43, 0
      %p497 = por %p495, %p496
      %p498 = scmp.ne.s32.totalorder %s486, %s487
      %p499 = scmp.eq.s32.totalorder %s44, 1
      %p500 = por %p498, %p499
      %p502 = scmp.ne.s32.totalorder %s487, %s501
      %p503 = scmp.eq.s32.totalorder %s44, 0
      %p504 = por %p502, %p503
      %s506 = sadd.s32 %s505, 1
      %p509 = scmp.eq.s32.totalorder %s38, 1
      %p510 = scmp.ne.s32.totalorder %s505, %s507
      %p511 = scmp.eq.s32.totalorder %s38, 0
      %p512 = por %p510, %p511
      %p513 = scmp.ne.s32.totalorder %s505, %s507
      %p514 = scmp.eq.s32.totalorder %s43, 1
      %p515 = por %p513, %p514
      %p516 = scmp.ne.s32.totalorder %s507, %s508
      %p517 = scmp.eq.s32.totalorder %s43, 0
      %p518 = por %p516, %p517
      %p519 = scmp.ne.s32.totalorder %s507, %s508
      %p520 = scmp.eq.s32.totalorder %s44, 1
      %p521 = por %p519, %p520
      %p523 = scmp.ne.s32.totalorder %s508, %s522
      %p524 = scmp.eq.s32.totalorder %s44, 0
      %p525 = por %p523, %p524
      %s526 = ssub.s32 %s45, %s57
      %s527 = ssub.s32 %s46, %s53
      %s528 = sor.u32 %s526, %s527
      %p529 = scmp.eq.s32.totalorder %s528, 0
      %s531 = sadd.s32 %s530, 1
      %s532 = scalar_select %p529, %s530, %s531
      %p535 = pneg %p529
      %p536 = scmp.eq.s32.totalorder %s38, 1
      %p537 = por %p535, %p536
      %p538 = scmp.ne.s32.totalorder %s530, %s533
      %p539 = scmp.eq.s32.totalorder %s38, 0
      %p540 = por %p538, %p539
      %p541 = scmp.ne.s32.totalorder %s530, %s533
      %p542 = scmp.eq.s32.totalorder %s43, 1
      %p543 = por %p541, %p542
      %p544 = scmp.ne.s32.totalorder %s533, %s534
      %p545 = scmp.eq.s32.totalorder %s43, 0
      %p546 = por %p544, %p545
      %p547 = scmp.ne.s32.totalorder %s533, %s534
      %p548 = scmp.eq.s32.totalorder %s44, 1
      %p549 = por %p547, %p548
      %p551 = scmp.ne.s32.totalorder %s534, %s550
      %p552 = scmp.eq.s32.totalorder %s44, 0
      %p553 = por %p551, %p552
      %p554 = scmp.le.s32.totalorder 1, %s38
      %p555 = scmp.lt.s32.totalorder %s38, 3
      %p556 = pnand %p554, %p555
      %p557 = pneg %p556
      // Predicated region
      $region9: #{tpu_custom_call.1} parent=5 // pred_check
        _
      $region10: #{tpu_custom_call.1} parent=5 // pred_check_branch
        %559 = sbr.rel (%p556) target = $region12
      $region11: #{tpu_custom_call.1} parent=5 // pred_region
        %s560 = ssub.s32 %s38, 1
        // Predicated region
        $region13: #{tpu_custom_call.1} parent=11 // pred_check
          %p561 = pneg %p203
        $region14: #{tpu_custom_call.1} parent=11 // pred_check_branch
          %563 = sbr.rel (%p561) target = $region16
        $region15: #{tpu_custom_call.1} parent=11 // pred_region
          _
        $region16: #{tpu_custom_call.1} parent=11 // pred_fallthru
          _
        // Predicated region
        $region17: #{tpu_custom_call.1} parent=11 // pred_check
          %p564 = pneg %p224
        $region18: #{tpu_custom_call.1} parent=11 // pred_check_branch
          %566 = sbr.rel (%p564) target = $region20
        $region19: #{tpu_custom_call.1} parent=11 // pred_region
          _
        $region20: #{tpu_custom_call.1} parent=11 // pred_fallthru
          _
        // Predicated region
        $region21: #{tpu_custom_call.1} parent=11 // pred_check
          %p567 = pneg %p245
        $region22: #{tpu_custom_call.1} parent=11 // pred_check_branch
          %569 = sbr.rel (%p567) target = $region24
        $region23: #{tpu_custom_call.1} parent=11 // pred_region
          _
        $region24: #{tpu_custom_call.1} parent=11 // pred_fallthru
          _
        // Predicated region
        $region25: #{tpu_custom_call.1} parent=11 // pred_check
          %p570 = pneg %p266
        $region26: #{tpu_custom_call.1} parent=11 // pred_check_branch
          %572 = sbr.rel (%p570) target = $region28
        $region27: #{tpu_custom_call.1} parent=11 // pred_region
          _
        $region28: #{tpu_custom_call.1} parent=11 // pred_fallthru
          _
        // Predicated region
        $region29: #{tpu_custom_call.1} parent=11 // pred_check
          %p573 = pneg %p287
        $region30: #{tpu_custom_call.1} parent=11 // pred_check_branch
          %575 = sbr.rel (%p573) target = $region32
        $region31: #{tpu_custom_call.1} parent=11 // pred_region
          _
        $region32: #{tpu_custom_call.1} parent=11 // pred_fallthru
          _
        // Predicated region
        $region33: #{tpu_custom_call.1} parent=11 // pred_check
          %p576 = pneg %p308
        $region34: #{tpu_custom_call.1} parent=11 // pred_check_branch
          %578 = sbr.rel (%p576) target = $region36
        $region35: #{tpu_custom_call.1} parent=11 // pred_region
          _
        $region36: #{tpu_custom_call.1} parent=11 // pred_fallthru
          _
        // Predicated region
        $region37: #{tpu_custom_call.1} parent=11 // pred_check
          %p579 = pneg %p329
        $region38: #{tpu_custom_call.1} parent=11 // pred_check_branch
          %581 = sbr.rel (%p579) target = $region40
        $region39: #{tpu_custom_call.1} parent=11 // pred_region
          %s583 = ssub.s32 512, 512
          %584 = vsyncadd [#allocation9], %s583
          %s585 = sshll.u32 [#allocation8], 4
          %s586 = int_to_ptr.vmem [resolvable:$true] %s585
          %591 = dma.hbm_to_vmem [thread:$0]  %s11, 512, %s586, [#allocation9], 64, 64, 4
        $region40: #{tpu_custom_call.1} parent=11 // pred_fallthru
          _
        // Predicated region
        $region41: #{tpu_custom_call.1} parent=11 // pred_check
          %p592 = pneg %p350
        $region42: #{tpu_custom_call.1} parent=11 // pred_check_branch
          %594 = sbr.rel (%p592) target = $region44
        $region43: #{tpu_custom_call.1} parent=11 // pred_region
          _
        $region44: #{tpu_custom_call.1} parent=11 // pred_fallthru
          _
        // Predicated region
        $region45: #{tpu_custom_call.1} parent=11 // pred_check
          %p595 = pneg %p371
        $region46: #{tpu_custom_call.1} parent=11 // pred_check_branch
          %597 = sbr.rel (%p595) target = $region48
        $region47: #{tpu_custom_call.1} parent=11 // pred_region
          %s599 = ssub.s32 512, 512
          %600 = vsyncadd [#allocation9], %s599
          %s601 = sshll.u32 [#allocation10], 4
          %s602 = int_to_ptr.vmem [resolvable:$true] %s601
          %607 = dma.hbm_to_vmem [thread:$0]  %s13, 512, %s602, [#allocation9], 64, 64, 4
        $region48: #{tpu_custom_call.1} parent=11 // pred_fallthru
          _
        // Predicated region
        $region49: #{tpu_custom_call.1} parent=11 // pred_check
          %p608 = pneg %p392
        $region50: #{tpu_custom_call.1} parent=11 // pred_check_branch
          %610 = sbr.rel (%p608) target = $region52
        $region51: #{tpu_custom_call.1} parent=11 // pred_region
          _
        $region52: #{tpu_custom_call.1} parent=11 // pred_fallthru
          _
        // Predicated region
        $region53: #{tpu_custom_call.1} parent=11 // pred_check
          %p611 = pneg %p413
        $region54: #{tpu_custom_call.1} parent=11 // pred_check_branch
          %613 = sbr.rel (%p611) target = $region56
        $region55: #{tpu_custom_call.1} parent=11 // pred_region
          %s615 = ssub.s32 512, 512
          %616 = vsyncadd [#allocation12], %s615
          %s617 = sshll.u32 [#allocation11], 4
          %s618 = int_to_ptr.vmem [resolvable:$true] %s617
          %623 = dma.hbm_to_vmem [thread:$0]  %s15, 512, %s618, [#allocation12], 64, 64, 4
        $region56: #{tpu_custom_call.1} parent=11 // pred_fallthru
          _
        // Predicated region
        $region57: #{tpu_custom_call.1} parent=11 // pred_check
          %p624 = pneg %p434
        $region58: #{tpu_custom_call.1} parent=11 // pred_check_branch
          %626 = sbr.rel (%p624) target = $region60
        $region59: #{tpu_custom_call.1} parent=11 // pred_region
          _
        $region60: #{tpu_custom_call.1} parent=11 // pred_fallthru
          _
        // Predicated region
        $region61: #{tpu_custom_call.1} parent=11 // pred_check
          %p627 = pneg %p455
        $region62: #{tpu_custom_call.1} parent=11 // pred_check_branch
          %629 = sbr.rel (%p627) target = $region64
        $region63: #{tpu_custom_call.1} parent=11 // pred_region
          _
        $region64: #{tpu_custom_call.1} parent=11 // pred_fallthru
          _
        // Predicated region
        $region65: #{tpu_custom_call.1} parent=11 // pred_check
          %p630 = pneg %p476
        $region66: #{tpu_custom_call.1} parent=11 // pred_check_branch
          %632 = sbr.rel (%p630) target = $region68
        $region67: #{tpu_custom_call.1} parent=11 // pred_region
          _
        $region68: #{tpu_custom_call.1} parent=11 // pred_fallthru
          _
        // Predicated region
        $region69: #{tpu_custom_call.1} parent=11 // pred_check
          %p633 = pneg %p497
        $region70: #{tpu_custom_call.1} parent=11 // pred_check_branch
          %635 = sbr.rel (%p633) target = $region72
        $region71: #{tpu_custom_call.1} parent=11 // pred_region
          _
        $region72: #{tpu_custom_call.1} parent=11 // pred_fallthru
          _
        // Predicated region
        $region73: #{tpu_custom_call.1} parent=11 // pred_check
          %p636 = pneg %p518
        $region74: #{tpu_custom_call.1} parent=11 // pred_check_branch
          %638 = sbr.rel (%p636) target = $region76
        $region75: #{tpu_custom_call.1} parent=11 // pred_region
          _
        $region76: #{tpu_custom_call.1} parent=11 // pred_fallthru
          _
      $region12: #{tpu_custom_call.1} parent=5 // pred_fallthru
        _
      %p639 = scmp.lt.s32.totalorder %s38, 2
      // Predicated region
      $region77: #{tpu_custom_call.1} parent=5 // pred_check
        %p640 = pneg %p639
      $region78: #{tpu_custom_call.1} parent=5 // pred_check_branch
        %642 = sbr.rel (%p640) target = $region80
      $region79: #{tpu_custom_call.1} parent=5 // pred_region
        // Predicated region
        $region81: #{tpu_custom_call.1} parent=79 // pred_check
          %p643 = pneg %p72
        $region82: #{tpu_custom_call.1} parent=79 // pred_check_branch
          %645 = sbr.rel (%p643) target = $region84
        $region83: #{tpu_custom_call.1} parent=79 // pred_region
          %s646 = sand.u32 %s62, 1
          %s647 = scalar_lea.sflag [#allocation3], %s646
          %s648 = sand.u32 %s62, 1
          %s649 = smul.addr %s648, 8
          %s650 = scalar_lea.vmem [#allocation2], %s649
          %s652 = ssub.s32 128, 128
          %653 = vsyncadd %s647, %s652
          %s654 = sadd.s32 %s46, %s45
          %s655 = smul.addr %s654, 128
          %s656 = scalar_lea.hbm %s0, %s655
          %s658 = sshll.u32 %s650, 4
          %s659 = int_to_ptr.vmem [resolvable:$true] %s658
          %661 = dma.hbm_to_vmem [thread:$0]  %s656, 128, %s659, %s647
        $region84: #{tpu_custom_call.1} parent=79 // pred_fallthru
          _
        // Predicated region
        $region85: #{tpu_custom_call.1} parent=79 // pred_check
          %p662 = pneg %p98
        $region86: #{tpu_custom_call.1} parent=79 // pred_check_branch
          %664 = sbr.rel (%p662) target = $region88
        $region87: #{tpu_custom_call.1} parent=79 // pred_region
          %s665 = sand.u32 %s38, 1
          %s666 = scalar_lea.sflag [#allocation6], %s665
          %s667 = sand.u32 %s88, 1
          %s668 = smul.addr %s667, 8
          %s669 = scalar_lea.vmem [#allocation5], %s668
          %s671 = ssub.s32 128, 128
          %672 = vsyncadd %s666, %s671
          %s673 = smul.addr %s45, 128
          %s674 = scalar_lea.hbm %s1, %s673
          %s676 = sshll.u32 %s669, 4
          %s677 = int_to_ptr.vmem [resolvable:$true] %s676
          %679 = dma.hbm_to_vmem [thread:$0]  %s674, 128, %s677, %s666
        $region88: #{tpu_custom_call.1} parent=79 // pred_fallthru
          _
        // Predicated region
        $region89: #{tpu_custom_call.1} parent=79 // pred_check
          %p680 = pneg %p124
        $region90: #{tpu_custom_call.1} parent=79 // pred_check_branch
          %682 = sbr.rel (%p680) target = $region92
        $region91: #{tpu_custom_call.1} parent=79 // pred_region
          %p683 = scmp.lt.s32.totalorder %s45, 1
          %s684 = scalar_select %p683, %s45, 1
          %s685 = smul.addr %s684, 2
          %s686 = smul.addr %s685, 8
          %s687 = scalar_lea.vmem %s2, %s686
        $region92: #{tpu_custom_call.1} parent=79 // pred_fallthru
          _
        // Predicated region
        $region93: #{tpu_custom_call.1} parent=79 // pred_check
          %p688 = pneg %p150
        $region94: #{tpu_custom_call.1} parent=79 // pred_check_branch
          %690 = sbr.rel (%p688) target = $region96
        $region95: #{tpu_custom_call.1} parent=79 // pred_region
          %p691 = scmp.lt.s32.totalorder %s45, 1
          %s692 = scalar_select %p691, %s45, 1
          %s693 = scalar_lea.vmem %s3, %s692
        $region96: #{tpu_custom_call.1} parent=79 // pred_fallthru
          _
        // Predicated region
        $region97: #{tpu_custom_call.1} parent=79 // pred_check
          %p694 = pneg %p176
        $region98: #{tpu_custom_call.1} parent=79 // pred_check_branch
          %696 = sbr.rel (%p694) target = $region100
        $region99: #{tpu_custom_call.1} parent=79 // pred_region
          %s697 = sand.u32 %s38, 1
          %s698 = scalar_lea.sflag [#allocation6], %s697
          %s699 = sand.u32 %s166, 1
          %s700 = scalar_lea.vmem [#allocation7], %s699
          %s702 = ssub.s32 16, 16
          %703 = vsyncadd %s698, %s702
          %s704 = smul.addr %s45, 16
          %s705 = scalar_lea.hbm %s4, %s704
          %s707 = sshll.u32 %s700, 4
          %s708 = int_to_ptr.vmem [resolvable:$true] %s707
          %710 = dma.hbm_to_vmem [thread:$0]  %s705, 16, %s708, %s698
        $region100: #{tpu_custom_call.1} parent=79 // pred_fallthru
          _
      $region80: #{tpu_custom_call.1} parent=5 // pred_fallthru
        _
      %p711 = scmp.le.s32.totalorder 1, %s38
      %p712 = scmp.lt.s32.totalorder %s38, 3
      %p713 = pnand %p711, %p712
      %p714 = pneg %p713
      // Predicated region
      $region101: #{tpu_custom_call.1} parent=5 // pred_check
        _
      $region102: #{tpu_custom_call.1} parent=5 // pred_check_branch
        %716 = sbr.rel (%p713) target = $region104
      $region103: #{tpu_custom_call.1} parent=5 // pred_region
        %s717 = ssub.s32 %s38, 1
        %s718 = sand.u32 %s65, 1
        %s719 = scalar_lea.sflag [#allocation3], %s718
        %s720 = sand.u32 %s65, 1
        %s721 = smul.addr %s720, 8
        %s722 = scalar_lea.vmem [#allocation2], %s721
        // Predicated region
        $region105: #{tpu_custom_call.1} parent=103 // pred_check
          %p723 = pneg %p78
        $region106: #{tpu_custom_call.1} parent=103 // pred_check_branch
          %725 = sbr.rel (%p723) target = $region108
        $region107: #{tpu_custom_call.1} parent=103 // pred_region
          %726 = dma.done %s719, 128
        $region108: #{tpu_custom_call.1} parent=103 // pred_fallthru
          _
        %s727 = sand.u32 %s43, 1
        %s728 = scalar_lea.sflag [#allocation6], %s727
        %s729 = sand.u32 %s91, 1
        %s730 = smul.addr %s729, 8
        %s731 = scalar_lea.vmem [#allocation5], %s730
        // Predicated region
        $region109: #{tpu_custom_call.1} parent=103 // pred_check
          %p732 = pneg %p104
        $region110: #{tpu_custom_call.1} parent=103 // pred_check_branch
          %734 = sbr.rel (%p732) target = $region112
        $region111: #{tpu_custom_call.1} parent=103 // pred_region
          %735 = dma.done %s728, 128
        $region112: #{tpu_custom_call.1} parent=103 // pred_fallthru
          _
        %s736 = sand.u32 %s43, 1
        %s737 = scalar_lea.sflag [#allocation6], %s736
        %s738 = sand.u32 %s169, 1
        %s739 = scalar_lea.vmem [#allocation7], %s738
        // Predicated region
        $region113: #{tpu_custom_call.1} parent=103 // pred_check
          %p740 = pneg %p182
        $region114: #{tpu_custom_call.1} parent=103 // pred_check_branch
          %742 = sbr.rel (%p740) target = $region116
        $region115: #{tpu_custom_call.1} parent=103 // pred_region
          %743 = dma.done %s737, 16
        $region116: #{tpu_custom_call.1} parent=103 // pred_fallthru
          _
        // Predicated region
        $region117: #{tpu_custom_call.1} parent=103 // pred_check
          %p744 = pneg %p329
        $region118: #{tpu_custom_call.1} parent=103 // pred_check_branch
          %746 = sbr.rel (%p744) target = $region120
        $region119: #{tpu_custom_call.1} parent=103 // pred_region
          %747 = dma.done [#allocation9], 512
        $region120: #{tpu_custom_call.1} parent=103 // pred_fallthru
          _
        // Predicated region
        $region121: #{tpu_custom_call.1} parent=103 // pred_check
          %p748 = pneg %p371
        $region122: #{tpu_custom_call.1} parent=103 // pred_check_branch
          %750 = sbr.rel (%p748) target = $region124
        $region123: #{tpu_custom_call.1} parent=103 // pred_region
          %751 = dma.done [#allocation9], 512
        $region124: #{tpu_custom_call.1} parent=103 // pred_fallthru
          _
        // Predicated region
        $region125: #{tpu_custom_call.1} parent=103 // pred_check
          %p752 = pneg %p413
        $region126: #{tpu_custom_call.1} parent=103 // pred_check_branch
          %754 = sbr.rel (%p752) target = $region128
        $region127: #{tpu_custom_call.1} parent=103 // pred_region
          %755 = dma.done [#allocation12], 512
        $region128: #{tpu_custom_call.1} parent=103 // pred_fallthru
          _
        %s756 = sand.u32 %s65, 1
        %s757 = scalar_lea.sflag [#allocation3], %s756
        %s758 = sand.u32 %s65, 1
        %s759 = smul.addr %s758, 8
        %s760 = scalar_lea.vmem [#allocation2], %s759
        %p761 = pneg %p78
        %p762 = pneg %p75
        %s763 = sand.u32 %s43, 1
        %s764 = scalar_lea.sflag [#allocation6], %s763
        %s765 = sand.u32 %s91, 1
        %s766 = smul.addr %s765, 8
        %s767 = scalar_lea.vmem [#allocation5], %s766
        %p768 = pneg %p104
        %p769 = pneg %p101
        %p770 = scmp.lt.s32.totalorder %s47, 1
        %s771 = scalar_select %p770, %s47, 1
        %s772 = smul.addr %s771, 2
        %s773 = smul.addr %s772, 8
        %s774 = scalar_lea.vmem %s2, %s773
        %p775 = pneg %p130
        %p776 = pneg %p127
        %p777 = scmp.lt.s32.totalorder %s47, 1
        %s778 = scalar_select %p777, %s47, 1
        %s779 = scalar_lea.vmem %s3, %s778
        %p780 = pneg %p156
        %p781 = pneg %p153
        %s782 = sand.u32 %s43, 1
        %s783 = scalar_lea.sflag [#allocation6], %s782
        %s784 = sand.u32 %s169, 1
        %s785 = scalar_lea.vmem [#allocation7], %s784
        %p786 = pneg %p182
        %p787 = pneg %p179
        %p788 = pneg %p203
        %p789 = pneg %p200
        %p790 = pneg %p224
        %p791 = pneg %p221
        %p792 = pneg %p245
        %p793 = pneg %p242
        %p794 = pneg %p266
        %p795 = pneg %p263
        %p796 = pneg %p287
        %p797 = pneg %p284
        %p798 = pneg %p308
        %p799 = pneg %p305
        %p800 = pneg %p329
        %p801 = pneg %p326
        %p802 = pneg %p350
        %p803 = pneg %p347
        %p804 = pneg %p371
        %p805 = pneg %p368
        %p806 = pneg %p392
        %p807 = pneg %p389
        %p808 = pneg %p413
        %p809 = pneg %p410
        %p810 = pneg %p434
        %p811 = pneg %p431
        %p812 = pneg %p455
        %p813 = pneg %p452
        %p814 = pneg %p476
        %p815 = pneg %p473
        %p816 = pneg %p497
        %p817 = pneg %p494
        %p818 = pneg %p518
        %p819 = pneg %p515
        %p820 = pneg %p546
        %p821 = pneg %p543
        %s822 = sand.u32 %s533, 1
        %s823 = scalar_lea.sflag [#allocation4], %s822
        %s824 = sand.u32 %s533, 1
        %s825 = smul.addr %s824, 8
        %s826 = scalar_lea.vmem [#allocation13], %s825
        %p827 = scmp.lt.s32.totalorder %s47, 1
        %s828 = scalar_select %p827, %s47, 1
        %s829 = smul.addr %s828, 2
        %s830 = smul.addr %s829, 8
        %s831 = scalar_lea.vmem %s2, %s830
        %p832 = scmp.lt.s32.totalorder %s47, 1
        %s833 = scalar_select %p832, %s47, 1
        %s834 = scalar_lea.vmem %s3, %s833
        %v836 = vld [vmem:[%s722] sm:$0xff]
        %v837 = vld [vmem:[%s5] sm:$0x7]
        %v838 = vld [vmem:[%s6] sm:$0x7]
        %s839 = smul.u32 %s48, 8
        %v840 = vld [vmem:[%s834] sm:$0x1]
        %vm841 = vcmp.gt.f32.partialorder %v840, 0.0
        %v842 = vsel %vm841, 1, 0
        %v843 = vlaneseq
        %v844 = vshrl.u32 %v843, 7
        %v845 = vsub.s32 0, %v844
        %v846 = vrot.slane %v842, %v845
        %vm847 = vcmp.eq.s32.totalorder %v846, 1
        %v848 = vlaneseq
        %v849 = vand.u32 %v848, 127
        %v850 = vlaneseq
        %v851 = vshrl.u32 %v850, 7
        %v852 = vstv %s839
        %v853 = vadd.s32 %v851, %v852
        %vm854 = vcmp.le.s32.totalorder %v849, %v853
        %vm855 = vmand %vm847, %vm854
        %v856 = vld [vmem:[%s739] sm:$0x1]
        %vm857 = vcmp.gt.f32.partialorder %v856, 0.0
        %v858 = vsel %vm857, 1, 0
        %v859 = vlaneseq
        %v860 = vshrl.u32 %v859, 7
        %v861 = vsub.s32 0, %v860
        %v862 = vrot.slane %v858, %v861
        %vm863 = vcmp.eq.s32.totalorder %v862, 1
        %vm864 = vcmask 523264
        %v865 = vsel %vm864, %v836, 0.0
        %866 = vadd.xlane.f32.xlu0 %v865
        %v867 = vpop.xlane.xlu0 %866
        %v868 = vrcp.pop 64.0
        %v869 = vmul.f32 %v867, %v868
        %v870 = vsub.f32 %v836, %v869
        %v871 = vmul.f32 %v870, %v870
        %v872 = vsel %vm864, %v871, 0.0
        %873 = vadd.xlane.f32.xlu0 %v872
        %v874 = vpop.xlane.xlu0 %873
        %v875 = vmul.f32 %v874, %v868
        %v876 = vadd.f32 %v875, 1e-05
        %v877 = vrsqrt.pop %v876
        %v878 = vmul.f32 %v870, %v877
        %v879 = vlaneseq
        %v880 = vshrl.u32 %v879, 7
        %v881 = vsub.s32 0, %v880
        %v882 = vrot.slane %v837, %v881
        %v883 = vmul.f32 %v878, %v882
        %v884 = vlaneseq
        %v885 = vshrl.u32 %v884, 7
        %v886 = vsub.s32 0, %v885
        %v887 = vrot.slane %v838, %v886
        %v888 = vadd.f32 %v883, %v887
        %v889 = vpack.c.bf16 %v888, %v888
        %v890 = vld [vmem:[%s7] sm:$0xff]
        %v891 = vld [vmem:[%s7 + $0x8] sm:$0xff]
        %v892 = vld [vmem:[%s7 + $0x10] sm:$0xff]
        %v893 = vld [vmem:[%s7 + $0x18] sm:$0xff]
        %v894 = vld [vmem:[%s7 + $0x20] sm:$0xff]
        %v895 = vld [vmem:[%s7 + $0x28] sm:$0xff]
        %v896 = vld [vmem:[%s7 + $0x30] sm:$0xff]
        %v897 = vld [vmem:[%s7 + $0x38] sm:$0xff]
        %v898 = vld [vmem:[%s8] sm:$0x3]
        %v900 = vlaneseq
        %v901 = vshrl.u32 %v900, 7
        %v902 = vsub.s32 0, %v901
        %v903 = vrot.slane %v898, %v902
        %v904 = vlaneseq
        %v905 = vshrl.u32 %v904, 7
        %v906 = vsub.s32 1, %v905
        %v907 = vrot.slane %v898, %v906
        %v918 = vunpack.c.l.b16 %v890
        %v919 = vunpack.c.h.b16 %v890
        %v920 = vunpack.c.l.b16 %v891
        %v921 = vunpack.c.h.b16 %v891
        %v922 = vunpack.c.l.b16 %v892
        %v923 = vunpack.c.h.b16 %v892
        %v924 = vunpack.c.l.b16 %v893
        %v925 = vunpack.c.h.b16 %v893
        %v926 = vunpack.c.l.b16 %v894
        %v927 = vunpack.c.h.b16 %v894
        %v928 = vunpack.c.l.b16 %v895
        %v929 = vunpack.c.h.b16 %v895
        %v930 = vunpack.c.l.b16 %v896
        %v931 = vunpack.c.h.b16 %v896
        %v932 = vunpack.c.l.b16 %v897
        %v933 = vunpack.c.h.b16 %v897
        %v934 = vpack.c.b16 %v920, %v918
        %v935 = vpack.c.b16 %v921, %v919
        %v936 = vpack.c.b16 %v924, %v922
        %v937 = vpack.c.b16 %v925, %v923
        %v938 = vpack.c.b16 %v928, %v926
        %v939 = vpack.c.b16 %v929, %v927
        %v940 = vpack.c.b16 %v932, %v930
        %v941 = vpack.c.b16 %v933, %v931
        %v951 = vsel %vm864, %v889, 0
        %953 = vmatprep.subr.bf16.mxu0 0
        %954 = vmatpush1.bf16.msra.mxu0 0
        %955 = vmatprep.subr.bf16.mxu0 0
        %956 = vmatpush1.bf16.msra.mxu0 0
        %957 = vmatprep.subr.bf16.mxu0 0
        %958 = vmatpush1.bf16.msra.mxu0 0
        %959 = vmatprep.subr.bf16.mxu0 0
        %960 = vmatpush1.bf16.msra.mxu0 0
        %961 = vmatprep.subr.bf16.mxu0 %v941
        %962 = vmatpush1.bf16.msra.mxu0 %v940
        %963 = vmatprep.subr.bf16.mxu0 %v939
        %964 = vmatpush1.bf16.msra.mxu0 %v938
        %965 = vmatprep.subr.bf16.mxu0 %v937
        %966 = vmatpush1.bf16.msra.mxu0 %v936
        %967 = vmatprep.subr.bf16.mxu0 %v935
        %968 = vmatpush1.bf16.msra.mxu0 %v934
        %969 = vmatprep.subr.bf16.mxu0 0
        %970 = vmatpush2.bf16.msra.mxu0 0
        %971 = vmatprep.subr.bf16.mxu0 0
        %972 = vmatpush2.bf16.msra.mxu0 0
        %973 = vmatprep.subr.bf16.mxu0 0
        %974 = vmatpush2.bf16.msra.mxu0 0
        %975 = vmatprep.subr.bf16.mxu0 0
        %976 = vmatpush2.bf16.msra.mxu0 0
        %977 = vmatprep.subr.bf16.mxu0 0
        %978 = vmatpush2.bf16.msra.mxu0 0
        %979 = vmatprep.subr.bf16.mxu0 0
        %980 = vmatpush2.bf16.msra.mxu0 0
        %981 = vmatprep.subr.bf16.mxu0 0
        %982 = vmatpush2.bf16.msra.mxu0 0
        %983 = vmatprep.subr.bf16.mxu0 0
        %984 = vmatpush2.bf16.msra.mxu0 0
        %985 = vmatprep.mubr.bf16.mxu0 0
        %986 = vmatmul.mubr.bf16.gmra.mxu0 %v951
        %v987 = vpop.f32.mrf.mxu0
        %v988 = vadd.f32 %v903, %v987
        %v989 = vpop.f32.mrf.mxu0
        %v990 = vadd.f32 %v907, %v989
        %v991 = vpop.f32.mrf.mxu0
        %v992 = vpop.f32.mrf.mxu0
        %993 = vdwg.mxu0
        %v994 = vpack.c.bf16 %v988, %v988
        %996 = vrot.lane.b32.xlu0 %v994, 64
        %v997 = vpop.permute.xlu0 %996
        %v999 = vsel %vm864, %v994, 0
        %v1002 = vsel %vm864, %v997, 0
        %1004 = vmatprep.subr.bf16.mxu0 0
        %1005 = vmatpush1.bf16.xpose.msra.mxu0 0
        %1006 = vmatprep.subr.bf16.mxu0 0
        %1007 = vmatpush1.bf16.xpose.msra.mxu0 0
        %1008 = vmatprep.subr.bf16.mxu0 0
        %1009 = vmatpush1.bf16.xpose.msra.mxu0 0
        %1010 = vmatprep.subr.bf16.mxu0 0
        %1011 = vmatpush1.bf16.xpose.msra.mxu0 0
        %1012 = vmatprep.subr.bf16.mxu0 0
        %1013 = vmatpush1.bf16.xpose.msra.mxu0 0
        %1014 = vmatprep.subr.bf16.mxu0 0
        %1015 = vmatpush1.bf16.xpose.msra.mxu0 0
        %1016 = vmatprep.subr.bf16.mxu0 0
        %1017 = vmatpush1.bf16.xpose.msra.mxu0 0
        %1018 = vmatprep.subr.bf16.mxu0 0
        %1019 = vmatpush1.bf16.xpose.msra.mxu0 %v1002
        %1020 = vmatprep.subr.bf16.mxu0 0
        %1021 = vmatpush2.bf16.xpose.msra.mxu0 0
        %1022 = vmatprep.subr.bf16.mxu0 0
        %1023 = vmatpush2.bf16.xpose.msra.mxu0 0
        %1024 = vmatprep.subr.bf16.mxu0 0
        %1025 = vmatpush2.bf16.xpose.msra.mxu0 0
        %1026 = vmatprep.subr.bf16.mxu0 0
        %1027 = vmatpush2.bf16.xpose.msra.mxu0 0
        %1028 = vmatprep.subr.bf16.mxu0 0
        %1029 = vmatpush2.bf16.xpose.msra.mxu0 0
        %1030 = vmatprep.subr.bf16.mxu0 0
        %1031 = vmatpush2.bf16.xpose.msra.mxu0 0
        %1032 = vmatprep.subr.bf16.mxu0 0
        %1033 = vmatpush2.bf16.xpose.msra.mxu0 0
        %1034 = vmatprep.subr.bf16.mxu0 0
        %1035 = vmatpush2.bf16.xpose.msra.mxu0 0
        %1036 = vmatprep.mubr.bf16.mxu0 0
        %1037 = vmatmul.mubr.bf16.gmra.mxu0 %v999
        %v1038 = vpop.f32.mrf.mxu0
        %v1039 = vadd.f32 0.0, %v1038
        %v1040 = vpop.f32.mrf.mxu0
        %v1041 = vpop.f32.mrf.mxu0
        %v1042 = vpop.f32.mrf.mxu0
        %1043 = vdwg.mxu0
        %v1044 = vmul.f32 %v1039, 0.125
        %v1045 = vsel %vm855, %v1044, -3.4028235e+38
        %vm1046 = vcmask 64512
        %v1047 = vsel %vm1046, %v1045, -inf
        %1048 = vmax.xlane.f32.xlu0 %v1047
        %v1049 = vpop.xlane.xlu0 %1048
        %v1050 = vsub.f32 %v1045, %v1049
        %v1051 = vmul.f32 %v1050, 1.442695
        %v1052 = vpow.pop %v1051
        %v1053 = vsel %vm1046, %v1052, 0.0
        %1054 = vadd.xlane.f32.xlu0 %v1053
        %v1055 = vpop.xlane.xlu0 %1054
        %v1056 = vrcp.pop %v1055
        %v1057 = vmul.f32 %v1052, %v1056
        %v1058 = vpack.c.bf16 %v1057, %v1057
        %v1059 = vpack.c.bf16 %v990, %v990
        %v1061 = vsel %vm1046, %v1058, 0
        %vm1063 = vcmask 1043456
        %v1065 = vsel %vm1063, %v1059, 0
        %1067 = vmatprep.subr.bf16.mxu0 0
        %1068 = vmatpush1.bf16.msra.mxu0 0
        %1069 = vmatprep.subr.bf16.mxu0 0
        %1070 = vmatpush1.bf16.msra.mxu0 0
        %1071 = vmatprep.subr.bf16.mxu0 0
        %1072 = vmatpush1.bf16.msra.mxu0 0
        %1073 = vmatprep.subr.bf16.mxu0 0
        %1074 = vmatpush1.bf16.msra.mxu0 0
        %1075 = vmatprep.subr.bf16.mxu0 0
        %1076 = vmatpush1.bf16.msra.mxu0 0
        %1077 = vmatprep.subr.bf16.mxu0 0
        %1078 = vmatpush1.bf16.msra.mxu0 0
        %1079 = vmatprep.subr.bf16.mxu0 0
        %1080 = vmatpush1.bf16.msra.mxu0 0
        %1081 = vmatprep.subr.bf16.mxu0 0
        %1082 = vmatpush1.bf16.msra.mxu0 %v1065
        %1083 = vmatprep.subr.bf16.mxu0 0
        %1084 = vmatpush2.bf16.msra.mxu0 0
        %1085 = vmatprep.subr.bf16.mxu0 0
        %1086 = vmatpush2.bf16.msra.mxu0 0
        %1087 = vmatprep.subr.bf16.mxu0 0
        %1088 = vmatpush2.bf16.msra.mxu0 0
        %1089 = vmatprep.subr.bf16.mxu0 0
        %1090 = vmatpush2.bf16.msra.mxu0 0
        %1091 = vmatprep.subr.bf16.mxu0 0
        %1092 = vmatpush2.bf16.msra.mxu0 0
        %1093 = vmatprep.subr.bf16.mxu0 0
        %1094 = vmatpush2.bf16.msra.mxu0 0
        %1095 = vmatprep.subr.bf16.mxu0 0
        %1096 = vmatpush2.bf16.msra.mxu0 0
        %1097 = vmatprep.subr.bf16.mxu0 0
        %1098 = vmatpush2.bf16.msra.mxu0 0
        %1099 = vmatprep.mubr.bf16.mxu0 0
        %1100 = vmatmul.mubr.bf16.gmra.mxu0 %v1061
        %v1101 = vpop.f32.mrf.mxu0
        %v1102 = vadd.f32 0.0, %v1101
        %v1103 = vpop.f32.mrf.mxu0
        %v1104 = vpop.f32.mrf.mxu0
        %v1105 = vpop.f32.mrf.mxu0
        %1106 = vdwg.mxu0
        %v1107 = vpack.c.bf16 %v1102, %v1102
        %v1108 = vld [vmem:[%s9] sm:$0xf]
        %v1109 = vld [vmem:[%s9 + $0x4] sm:$0xf]
        %v1110 = vld [vmem:[%s9 + $0x8] sm:$0xf]
        %v1111 = vld [vmem:[%s9 + $0xc] sm:$0xf]
        %v1112 = vld [vmem:[%s9 + $0x10] sm:$0xf]
        %v1113 = vld [vmem:[%s9 + $0x14] sm:$0xf]
        %v1114 = vld [vmem:[%s9 + $0x18] sm:$0xf]
        %v1115 = vld [vmem:[%s9 + $0x1c] sm:$0xf]
        %v1124 = vunpack.c.l.b16 %v1108
        %v1125 = vunpack.c.l.b16 %v1109
        %v1126 = vunpack.c.l.b16 %v1110
        %v1127 = vunpack.c.l.b16 %v1111
        %v1128 = vunpack.c.l.b16 %v1112
        %v1129 = vunpack.c.l.b16 %v1113
        %v1130 = vunpack.c.l.b16 %v1114
        %v1131 = vunpack.c.l.b16 %v1115
        %v1132 = vpack.c.b16 %v1125, %v1124
        %v1133 = vpack.c.b16 %v1127, %v1126
        %v1134 = vpack.c.b16 %v1129, %v1128
        %v1135 = vpack.c.b16 %v1131, %v1130
        %v1141 = vsel %vm864, %v1107, 0
        %1143 = vmatprep.subr.bf16.mxu0 0
        %1144 = vmatpush1.bf16.msra.mxu0 0
        %1145 = vmatprep.subr.bf16.mxu0 0
        %1146 = vmatpush1.bf16.msra.mxu0 0
        %1147 = vmatprep.subr.bf16.mxu0 0
        %1148 = vmatpush1.bf16.msra.mxu0 0
        %1149 = vmatprep.subr.bf16.mxu0 0
        %1150 = vmatpush1.bf16.msra.mxu0 0
        %1151 = vmatprep.subr.bf16.mxu0 0
        %1152 = vmatpush1.bf16.msra.mxu0 %v1135
        %1153 = vmatprep.subr.bf16.mxu0 0
        %1154 = vmatpush1.bf16.msra.mxu0 %v1134
        %1155 = vmatprep.subr.bf16.mxu0 0
        %1156 = vmatpush1.bf16.msra.mxu0 %v1133
        %1157 = vmatprep.subr.bf16.mxu0 0
        %1158 = vmatpush1.bf16.msra.mxu0 %v1132
        %1159 = vmatprep.subr.bf16.mxu0 0
        %1160 = vmatpush2.bf16.msra.mxu0 0
        %1161 = vmatprep.subr.bf16.mxu0 0
        %1162 = vmatpush2.bf16.msra.mxu0 0
        %1163 = vmatprep.subr.bf16.mxu0 0
        %1164 = vmatpush2.bf16.msra.mxu0 0
        %1165 = vmatprep.subr.bf16.mxu0 0
        %1166 = vmatpush2.bf16.msra.mxu0 0
        %1167 = vmatprep.subr.bf16.mxu0 0
        %1168 = vmatpush2.bf16.msra.mxu0 0
        %1169 = vmatprep.subr.bf16.mxu0 0
        %1170 = vmatpush2.bf16.msra.mxu0 0
        %1171 = vmatprep.subr.bf16.mxu0 0
        %1172 = vmatpush2.bf16.msra.mxu0 0
        %1173 = vmatprep.subr.bf16.mxu0 0
        %1174 = vmatpush2.bf16.msra.mxu0 0
        %1175 = vmatprep.mubr.bf16.mxu0 0
        %1176 = vmatmul.mubr.bf16.gmra.mxu0 %v1141
        %v1177 = vpop.f32.mrf.mxu0
        %v1178 = vadd.f32 0.0, %v1177
        %v1179 = vpop.f32.mrf.mxu0
        %v1180 = vpop.f32.mrf.mxu0
        %v1181 = vpop.f32.mrf.mxu0
        %1182 = vdwg.mxu0
        %v1183 = vadd.f32 %v836, %v1178
        %v1184 = vld [vmem:[%s10] sm:$0x1]
        %v1186 = vlaneseq
        %v1187 = vshrl.u32 %v1186, 7
        %v1188 = vsub.s32 0, %v1187
        %v1189 = vrot.slane %v1184, %v1188
        %v1191 = vadd.f32 %v1183, %v1189
        %v1192 = vsel %vm864, %v1191, 0.0
        %1193 = vadd.xlane.f32.xlu0 %v1192
        %v1194 = vpop.xlane.xlu0 %1193
        %v1195 = vmul.f32 %v1194, %v868
        %v1196 = vsub.f32 %v1191, %v1195
        %v1197 = vmul.f32 %v1196, %v1196
        %v1198 = vsel %vm864, %v1197, 0.0
        %1199 = vadd.xlane.f32.xlu0 %v1198
        %v1200 = vpop.xlane.xlu0 %1199
        %v1201 = vmul.f32 %v1200, %v868
        %v1202 = vadd.f32 %v1201, 1e-05
        %v1203 = vrsqrt.pop %v1202
        %v1204 = vmul.f32 %v1196, %v1203
        %v1205 = vlaneseq
        %v1206 = vshrl.u32 %v1205, 7
        %v1207 = vsub.s32 1, %v1206
        %v1208 = vrot.slane %v837, %v1207
        %v1209 = vmul.f32 %v1204, %v1208
        %v1210 = vlaneseq
        %v1211 = vshrl.u32 %v1210, 7
        %v1212 = vsub.s32 1, %v1211
        %v1213 = vrot.slane %v838, %v1212
        %v1214 = vadd.f32 %v1209, %v1213
        %v1215 = vpack.c.bf16 %v1214, %v1214
        %v1216 = vld [vmem:[#allocation8] sm:$0xf]
        %v1217 = vld [vmem:[#allocation8 + $0x4] sm:$0xf]
        %v1218 = vld [vmem:[#allocation8 + $0x8] sm:$0xf]
        %v1219 = vld [vmem:[#allocation8 + $0xc] sm:$0xf]
        %v1220 = vld [vmem:[#allocation8 + $0x10] sm:$0xf]
        %v1221 = vld [vmem:[#allocation8 + $0x14] sm:$0xf]
        %v1222 = vld [vmem:[#allocation8 + $0x18] sm:$0xf]
        %v1223 = vld [vmem:[#allocation8 + $0x1c] sm:$0xf]
        %v1224 = vld [vmem:[%s12] sm:$0x1]
        %v1226 = vlaneseq
        %v1227 = vshrl.u32 %v1226, 7
        %v1228 = vsub.s32 0, %v1227
        %v1229 = vrot.slane %v1224, %v1228
        %v1239 = vunpack.c.l.b16 %v1216
        %v1240 = vunpack.c.l.b16 %v1217
        %v1241 = vunpack.c.l.b16 %v1218
        %v1242 = vunpack.c.l.b16 %v1219
        %v1243 = vunpack.c.l.b16 %v1220
        %v1244 = vunpack.c.l.b16 %v1221
        %v1245 = vunpack.c.l.b16 %v1222
        %v1246 = vunpack.c.l.b16 %v1223
        %v1247 = vpack.c.b16 %v1240, %v1239
        %v1248 = vpack.c.b16 %v1242, %v1241
        %v1249 = vpack.c.b16 %v1244, %v1243
        %v1250 = vpack.c.b16 %v1246, %v1245
        %v1256 = vsel %vm864, %v1215, 0
        %1258 = vmatprep.subr.bf16.mxu0 0
        %1259 = vmatpush1.bf16.msra.mxu0 0
        %1260 = vmatprep.subr.bf16.mxu0 0
        %1261 = vmatpush1.bf16.msra.mxu0 0
        %1262 = vmatprep.subr.bf16.mxu0 0
        %1263 = vmatpush1.bf16.msra.mxu0 0
        %1264 = vmatprep.subr.bf16.mxu0 0
        %1265 = vmatpush1.bf16.msra.mxu0 0
        %1266 = vmatprep.subr.bf16.mxu0 0
        %1267 = vmatpush1.bf16.msra.mxu0 %v1250
        %1268 = vmatprep.subr.bf16.mxu0 0
        %1269 = vmatpush1.bf16.msra.mxu0 %v1249
        %1270 = vmatprep.subr.bf16.mxu0 0
        %1271 = vmatpush1.bf16.msra.mxu0 %v1248
        %1272 = vmatprep.subr.bf16.mxu0 0
        %1273 = vmatpush1.bf16.msra.mxu0 %v1247
        %1274 = vmatprep.subr.bf16.mxu0 0
        %1275 = vmatpush2.bf16.msra.mxu0 0
        %1276 = vmatprep.subr.bf16.mxu0 0
        %1277 = vmatpush2.bf16.msra.mxu0 0
        %1278 = vmatprep.subr.bf16.mxu0 0
        %1279 = vmatpush2.bf16.msra.mxu0 0
        %1280 = vmatprep.subr.bf16.mxu0 0
        %1281 = vmatpush2.bf16.msra.mxu0 0
        %1282 = vmatprep.subr.bf16.mxu0 0
        %1283 = vmatpush2.bf16.msra.mxu0 0
        %1284 = vmatprep.subr.bf16.mxu0 0
        %1285 = vmatpush2.bf16.msra.mxu0 0
        %1286 = vmatprep.subr.bf16.mxu0 0
        %1287 = vmatpush2.bf16.msra.mxu0 0
        %1288 = vmatprep.subr.bf16.mxu0 0
        %1289 = vmatpush2.bf16.msra.mxu0 0
        %1290 = vmatprep.mubr.bf16.mxu0 0
        %1291 = vmatmul.mubr.bf16.gmra.mxu0 %v1256
        %v1292 = vpop.f32.mrf.mxu0
        %v1293 = vadd.f32 %v1229, %v1292
        %v1294 = vpop.f32.mrf.mxu0
        %v1295 = vpop.f32.mrf.mxu0
        %v1296 = vpop.f32.mrf.mxu0
        %1297 = vdwg.mxu0
        %v1298 = vld [vmem:[%s831] sm:$0xff]
        %v1299 = vld [vmem:[%s831 + $0x8] sm:$0xff]
        %v1300 = vpack.c.bf16 %v1299, %v1298
        %v1301 = vld [vmem:[#allocation10] sm:$0xf]
        %v1302 = vld [vmem:[#allocation10 + $0x4] sm:$0xf]
        %v1303 = vld [vmem:[#allocation10 + $0x8] sm:$0xf]
        %v1304 = vld [vmem:[#allocation10 + $0xc] sm:$0xf]
        %v1305 = vld [vmem:[#allocation10 + $0x10] sm:$0xf]
        %v1306 = vld [vmem:[#allocation10 + $0x14] sm:$0xf]
        %v1307 = vld [vmem:[#allocation10 + $0x18] sm:$0xf]
        %v1308 = vld [vmem:[#allocation10 + $0x1c] sm:$0xf]
        %v1309 = vld [vmem:[%s14] sm:$0x1]
        %v1311 = vlaneseq
        %v1312 = vshrl.u32 %v1311, 7
        %v1313 = vsub.s32 0, %v1312
        %v1314 = vrot.slane %v1309, %v1313
        %v1324 = vunpack.c.l.b16 %v1301
        %v1325 = vunpack.c.l.b16 %v1302
        %v1326 = vunpack.c.l.b16 %v1303
        %v1327 = vunpack.c.l.b16 %v1304
        %v1328 = vunpack.c.l.b16 %v1305
        %v1329 = vunpack.c.l.b16 %v1306
        %v1330 = vunpack.c.l.b16 %v1307
        %v1331 = vunpack.c.l.b16 %v1308
        %v1332 = vpack.c.b16 %v1325, %v1324
        %v1333 = vpack.c.b16 %v1327, %v1326
        %v1334 = vpack.c.b16 %v1329, %v1328
        %v1335 = vpack.c.b16 %v1331, %v1330
        %v1341 = vsel %vm864, %v1300, 0
        %1343 = vmatprep.subr.bf16.mxu0 0
        %1344 = vmatpush1.bf16.msra.mxu0 0
        %1345 = vmatprep.subr.bf16.mxu0 0
        %1346 = vmatpush1.bf16.msra.mxu0 0
        %1347 = vmatprep.subr.bf16.mxu0 0
        %1348 = vmatpush1.bf16.msra.mxu0 0
        %1349 = vmatprep.subr.bf16.mxu0 0
        %1350 = vmatpush1.bf16.msra.mxu0 0
        %1351 = vmatprep.subr.bf16.mxu0 0
        %1352 = vmatpush1.bf16.msra.mxu0 %v1335
        %1353 = vmatprep.subr.bf16.mxu0 0
        %1354 = vmatpush1.bf16.msra.mxu0 %v1334
        %1355 = vmatprep.subr.bf16.mxu0 0
        %1356 = vmatpush1.bf16.msra.mxu0 %v1333
        %1357 = vmatprep.subr.bf16.mxu0 0
        %1358 = vmatpush1.bf16.msra.mxu0 %v1332
        %1359 = vmatprep.subr.bf16.mxu0 0
        %1360 = vmatpush2.bf16.msra.mxu0 0
        %1361 = vmatprep.subr.bf16.mxu0 0
        %1362 = vmatpush2.bf16.msra.mxu0 0
        %1363 = vmatprep.subr.bf16.mxu0 0
        %1364 = vmatpush2.bf16.msra.mxu0 0
        %1365 = vmatprep.subr.bf16.mxu0 0
        %1366 = vmatpush2.bf16.msra.mxu0 0
        %1367 = vmatprep.subr.bf16.mxu0 0
        %1368 = vmatpush2.bf16.msra.mxu0 0
        %1369 = vmatprep.subr.bf16.mxu0 0
        %1370 = vmatpush2.bf16.msra.mxu0 0
        %1371 = vmatprep.subr.bf16.mxu0 0
        %1372 = vmatpush2.bf16.msra.mxu0 0
        %1373 = vmatprep.subr.bf16.mxu0 0
        %1374 = vmatpush2.bf16.msra.mxu0 0
        %1375 = vmatprep.mubr.bf16.mxu0 0
        %1376 = vmatmul.mubr.bf16.gmra.mxu0 %v1341
        %v1377 = vpop.f32.mrf.mxu0
        %v1378 = vadd.f32 %v1314, %v1377
        %v1379 = vpop.f32.mrf.mxu0
        %v1380 = vpop.f32.mrf.mxu0
        %v1381 = vadd.f32 %v1314, %v1380
        %v1382 = vpop.f32.mrf.mxu0
        %1383 = vdwg.mxu0
        %v1384 = vpack.c.bf16 %v1293, %v1293
        %v1385 = vpack.c.bf16 %v1381, %v1378
        %v1387 = vsel %vm864, %v1384, 0
        %v1390 = vsel %vm864, %v1385, 0
        %1392 = vmatprep.subr.bf16.mxu0 0
        %1393 = vmatpush1.bf16.xpose.msra.mxu0 0
        %1394 = vmatprep.subr.bf16.mxu0 0
        %1395 = vmatpush1.bf16.xpose.msra.mxu0 0
        %1396 = vmatprep.subr.bf16.mxu0 0
        %1397 = vmatpush1.bf16.xpose.msra.mxu0 0
        %1398 = vmatprep.subr.bf16.mxu0 0
        %1399 = vmatpush1.bf16.xpose.msra.mxu0 0
        %1400 = vmatprep.subr.bf16.mxu0 0
        %1401 = vmatpush1.bf16.xpose.msra.mxu0 0
        %1402 = vmatprep.subr.bf16.mxu0 0
        %1403 = vmatpush1.bf16.xpose.msra.mxu0 0
        %1404 = vmatprep.subr.bf16.mxu0 0
        %1405 = vmatpush1.bf16.xpose.msra.mxu0 0
        %1406 = vmatprep.subr.bf16.mxu0 0
        %1407 = vmatpush1.bf16.xpose.msra.mxu0 %v1390
        %1408 = vmatprep.subr.bf16.mxu0 0
        %1409 = vmatpush2.bf16.xpose.msra.mxu0 0
        %1410 = vmatprep.subr.bf16.mxu0 0
        %1411 = vmatpush2.bf16.xpose.msra.mxu0 0
        %1412 = vmatprep.subr.bf16.mxu0 0
        %1413 = vmatpush2.bf16.xpose.msra.mxu0 0
        %1414 = vmatprep.subr.bf16.mxu0 0
        %1415 = vmatpush2.bf16.xpose.msra.mxu0 0
        %1416 = vmatprep.subr.bf16.mxu0 0
        %1417 = vmatpush2.bf16.xpose.msra.mxu0 0
        %1418 = vmatprep.subr.bf16.mxu0 0
        %1419 = vmatpush2.bf16.xpose.msra.mxu0 0
        %1420 = vmatprep.subr.bf16.mxu0 0
        %1421 = vmatpush2.bf16.xpose.msra.mxu0 0
        %1422 = vmatprep.subr.bf16.mxu0 0
        %1423 = vmatpush2.bf16.xpose.msra.mxu0 0
        %1424 = vmatprep.mubr.bf16.mxu0 0
        %1425 = vmatmul.mubr.bf16.gmra.mxu0 %v1387
        %v1426 = vpop.f32.mrf.mxu0
        %v1427 = vadd.f32 0.0, %v1426
        %v1428 = vpop.f32.mrf.mxu0
        %v1429 = vpop.f32.mrf.mxu0
        %v1430 = vpop.f32.mrf.mxu0
        %1431 = vdwg.mxu0
        %v1432 = vmul.f32 %v1427, 0.125
        %v1433 = vsel %vm863, %v1432, -3.4028235e+38
        %vm1434 = vcmask 130048
        %v1435 = vsel %vm1434, %v1433, -inf
        %1436 = vmax.xlane.f32.xlu0 %v1435
        %v1437 = vpop.xlane.xlu0 %1436
        %v1438 = vsub.f32 %v1433, %v1437
        %v1439 = vmul.f32 %v1438, 1.442695
        %v1440 = vpow.pop %v1439
        %v1441 = vsel %vm1434, %v1440, 0.0
        %1442 = vadd.xlane.f32.xlu0 %v1441
        %v1443 = vpop.xlane.xlu0 %1442
        %v1444 = vrcp.pop %v1443
        %v1445 = vmul.f32 %v1440, %v1444
        %v1446 = vpack.c.bf16 %v1445, %v1445
        %1448 = vrot.lane.b32.xlu0 %v1385, 64
        %v1449 = vpop.permute.xlu0 %1448
        %v1452 = vsel %vm1434, %v1446, 0
        %1454 = vmatprep.subr.bf16.mxu0 0
        %1455 = vmatpush1.bf16.msra.mxu0 0
        %1456 = vmatprep.subr.bf16.mxu0 0
        %1457 = vmatpush1.bf16.msra.mxu0 0
        %1458 = vmatprep.subr.bf16.mxu0 0
        %1459 = vmatpush1.bf16.msra.mxu0 0
        %1460 = vmatprep.subr.bf16.mxu0 0
        %1461 = vmatpush1.bf16.msra.mxu0 0
        %1462 = vmatprep.subr.bf16.mxu0 0
        %1463 = vmatpush1.bf16.msra.mxu0 0
        %1464 = vmatprep.subr.bf16.mxu0 0
        %1465 = vmatpush1.bf16.msra.mxu0 0
        %1466 = vmatprep.subr.bf16.mxu0 0
        %1467 = vmatpush1.bf16.msra.mxu0 0
        %1468 = vmatprep.subr.bf16.mxu0 0
        %1469 = vmatpush1.bf16.msra.mxu0 %v1449
        %1470 = vmatprep.subr.bf16.mxu0 0
        %1471 = vmatpush2.bf16.msra.mxu0 0
        %1472 = vmatprep.subr.bf16.mxu0 0
        %1473 = vmatpush2.bf16.msra.mxu0 0
        %1474 = vmatprep.subr.bf16.mxu0 0
        %1475 = vmatpush2.bf16.msra.mxu0 0
        %1476 = vmatprep.subr.bf16.mxu0 0
        %1477 = vmatpush2.bf16.msra.mxu0 0
        %1478 = vmatprep.subr.bf16.mxu0 0
        %1479 = vmatpush2.bf16.msra.mxu0 0
        %1480 = vmatprep.subr.bf16.mxu0 0
        %1481 = vmatpush2.bf16.msra.mxu0 0
        %1482 = vmatprep.subr.bf16.mxu0 0
        %1483 = vmatpush2.bf16.msra.mxu0 0
        %1484 = vmatprep.subr.bf16.mxu0 0
        %1485 = vmatpush2.bf16.msra.mxu0 0
        %1486 = vmatprep.mubr.bf16.mxu0 0
        %1487 = vmatmul.mubr.bf16.gmra.mxu0 %v1452
        %v1488 = vpop.f32.mrf.mxu0
        %v1489 = vadd.f32 0.0, %v1488
        %v1490 = vpop.f32.mrf.mxu0
        %v1491 = vpop.f32.mrf.mxu0
        %v1492 = vpop.f32.mrf.mxu0
        %1493 = vdwg.mxu0
        %v1494 = vpack.c.bf16 %v1489, %v1489
        %v1495 = vld [vmem:[#allocation11] sm:$0xf]
        %v1496 = vld [vmem:[#allocation11 + $0x4] sm:$0xf]
        %v1497 = vld [vmem:[#allocation11 + $0x8] sm:$0xf]
        %v1498 = vld [vmem:[#allocation11 + $0xc] sm:$0xf]
        %v1499 = vld [vmem:[#allocation11 + $0x10] sm:$0xf]
        %v1500 = vld [vmem:[#allocation11 + $0x14] sm:$0xf]
        %v1501 = vld [vmem:[#allocation11 + $0x18] sm:$0xf]
        %v1502 = vld [vmem:[#allocation11 + $0x1c] sm:$0xf]
        %v1511 = vunpack.c.l.b16 %v1495
        %v1512 = vunpack.c.l.b16 %v1496
        %v1513 = vunpack.c.l.b16 %v1497
        %v1514 = vunpack.c.l.b16 %v1498
        %v1515 = vunpack.c.l.b16 %v1499
        %v1516 = vunpack.c.l.b16 %v1500
        %v1517 = vunpack.c.l.b16 %v1501
        %v1518 = vunpack.c.l.b16 %v1502
        %v1519 = vpack.c.b16 %v1512, %v1511
        %v1520 = vpack.c.b16 %v1514, %v1513
        %v1521 = vpack.c.b16 %v1516, %v1515
        %v1522 = vpack.c.b16 %v1518, %v1517
        %v1528 = vsel %vm864, %v1494, 0
        %1530 = vmatprep.subr.bf16.mxu0 0
        %1531 = vmatpush1.bf16.msra.mxu0 0
        %1532 = vmatprep.subr.bf16.mxu0 0
        %1533 = vmatpush1.bf16.msra.mxu0 0
        %1534 = vmatprep.subr.bf16.mxu0 0
        %1535 = vmatpush1.bf16.msra.mxu0 0
        %1536 = vmatprep.subr.bf16.mxu0 0
        %1537 = vmatpush1.bf16.msra.mxu0 0
        %1538 = vmatprep.subr.bf16.mxu0 0
        %1539 = vmatpush1.bf16.msra.mxu0 %v1522
        %1540 = vmatprep.subr.bf16.mxu0 0
        %1541 = vmatpush1.bf16.msra.mxu0 %v1521
        %1542 = vmatprep.subr.bf16.mxu0 0
        %1543 = vmatpush1.bf16.msra.mxu0 %v1520
        %1544 = vmatprep.subr.bf16.mxu0 0
        %1545 = vmatpush1.bf16.msra.mxu0 %v1519
        %1546 = vmatprep.subr.bf16.mxu0 0
        %1547 = vmatpush2.bf16.msra.mxu0 0
        %1548 = vmatprep.subr.bf16.mxu0 0
        %1549 = vmatpush2.bf16.msra.mxu0 0
        %1550 = vmatprep.subr.bf16.mxu0 0
        %1551 = vmatpush2.bf16.msra.mxu0 0
        %1552 = vmatprep.subr.bf16.mxu0 0
        %1553 = vmatpush2.bf16.msra.mxu0 0
        %1554 = vmatprep.subr.bf16.mxu0 0
        %1555 = vmatpush2.bf16.msra.mxu0 0
        %1556 = vmatprep.subr.bf16.mxu0 0
        %1557 = vmatpush2.bf16.msra.mxu0 0
        %1558 = vmatprep.subr.bf16.mxu0 0
        %1559 = vmatpush2.bf16.msra.mxu0 0
        %1560 = vmatprep.subr.bf16.mxu0 0
        %1561 = vmatpush2.bf16.msra.mxu0 0
        %1562 = vmatprep.mubr.bf16.mxu0 0
        %1563 = vmatmul.mubr.bf16.gmra.mxu0 %v1528
        %v1564 = vpop.f32.mrf.mxu0
        %v1565 = vadd.f32 0.0, %v1564
        %v1566 = vpop.f32.mrf.mxu0
        %v1567 = vpop.f32.mrf.mxu0
        %v1568 = vpop.f32.mrf.mxu0
        %1569 = vdwg.mxu0
        %v1570 = vadd.f32 %v1191, %v1565
        %v1571 = vld [vmem:[%s16] sm:$0x1]
        %v1573 = vlaneseq
        %v1574 = vshrl.u32 %v1573, 7
        %v1575 = vsub.s32 0, %v1574
        %v1576 = vrot.slane %v1571, %v1575
        %v1578 = vadd.f32 %v1570, %v1576
        %v1579 = vsel %vm864, %v1578, 0.0
        %1580 = vadd.xlane.f32.xlu0 %v1579
        %v1581 = vpop.xlane.xlu0 %1580
        %v1582 = vmul.f32 %v1581, %v868
        %v1583 = vsub.f32 %v1578, %v1582
        %v1584 = vmul.f32 %v1583, %v1583
        %v1585 = vsel %vm864, %v1584, 0.0
        %1586 = vadd.xlane.f32.xlu0 %v1585
        %v1587 = vpop.xlane.xlu0 %1586
        %v1588 = vmul.f32 %v1587, %v868
        %v1589 = vadd.f32 %v1588, 1e-05
        %v1590 = vrsqrt.pop %v1589
        %v1591 = vmul.f32 %v1583, %v1590
        %v1592 = vlaneseq
        %v1593 = vshrl.u32 %v1592, 7
        %v1594 = vsub.s32 2, %v1593
        %v1595 = vrot.slane %v837, %v1594
        %v1596 = vmul.f32 %v1591, %v1595
        %v1597 = vlaneseq
        %v1598 = vshrl.u32 %v1597, 7
        %v1599 = vsub.s32 2, %v1598
        %v1600 = vrot.slane %v838, %v1599
        %v1601 = vadd.f32 %v1596, %v1600
        %v1602 = vpack.c.bf16 %v1601, %v1601
        %v1603 = vld [vmem:[%s17] sm:$0xff]
        %v1604 = vld [vmem:[%s17 + $0x8] sm:$0xff]
        %v1605 = vld [vmem:[%s17 + $0x10] sm:$0xff]
        %v1606 = vld [vmem:[%s17 + $0x18] sm:$0xff]
        %v1607 = vld [vmem:[%s17 + $0x20] sm:$0xff]
        %v1608 = vld [vmem:[%s17 + $0x28] sm:$0xff]
        %v1609 = vld [vmem:[%s17 + $0x30] sm:$0xff]
        %v1610 = vld [vmem:[%s17 + $0x38] sm:$0xff]
        %v1611 = vld [vmem:[%s18] sm:$0x3]
        %v1613 = vlaneseq
        %v1614 = vshrl.u32 %v1613, 7
        %v1615 = vsub.s32 0, %v1614
        %v1616 = vrot.slane %v1611, %v1615
        %v1617 = vlaneseq
        %v1618 = vshrl.u32 %v1617, 7
        %v1619 = vsub.s32 1, %v1618
        %v1620 = vrot.slane %v1611, %v1619
        %v1631 = vunpack.c.l.b16 %v1603
        %v1632 = vunpack.c.h.b16 %v1603
        %v1633 = vunpack.c.l.b16 %v1604
        %v1634 = vunpack.c.h.b16 %v1604
        %v1635 = vunpack.c.l.b16 %v1605
        %v1636 = vunpack.c.h.b16 %v1605
        %v1637 = vunpack.c.l.b16 %v1606
        %v1638 = vunpack.c.h.b16 %v1606
        %v1639 = vunpack.c.l.b16 %v1607
        %v1640 = vunpack.c.h.b16 %v1607
        %v1641 = vunpack.c.l.b16 %v1608
        %v1642 = vunpack.c.h.b16 %v1608
        %v1643 = vunpack.c.l.b16 %v1609
        %v1644 = vunpack.c.h.b16 %v1609
        %v1645 = vunpack.c.l.b16 %v1610
        %v1646 = vunpack.c.h.b16 %v1610
        %v1647 = vpack.c.b16 %v1633, %v1631
        %v1648 = vpack.c.b16 %v1634, %v1632
        %v1649 = vpack.c.b16 %v1637, %v1635
        %v1650 = vpack.c.b16 %v1638, %v1636
        %v1651 = vpack.c.b16 %v1641, %v1639
        %v1652 = vpack.c.b16 %v1642, %v1640
        %v1653 = vpack.c.b16 %v1645, %v1643
        %v1654 = vpack.c.b16 %v1646, %v1644
        %v1664 = vsel %vm864, %v1602, 0
        %1666 = vmatprep.subr.bf16.mxu0 0
        %1667 = vmatpush1.bf16.msra.mxu0 0
        %1668 = vmatprep.subr.bf16.mxu0 0
        %1669 = vmatpush1.bf16.msra.mxu0 0
        %1670 = vmatprep.subr.bf16.mxu0 0
        %1671 = vmatpush1.bf16.msra.mxu0 0
        %1672 = vmatprep.subr.bf16.mxu0 0
        %1673 = vmatpush1.bf16.msra.mxu0 0
        %1674 = vmatprep.subr.bf16.mxu0 %v1654
        %1675 = vmatpush1.bf16.msra.mxu0 %v1653
        %1676 = vmatprep.subr.bf16.mxu0 %v1652
        %1677 = vmatpush1.bf16.msra.mxu0 %v1651
        %1678 = vmatprep.subr.bf16.mxu0 %v1650
        %1679 = vmatpush1.bf16.msra.mxu0 %v1649
        %1680 = vmatprep.subr.bf16.mxu0 %v1648
        %1681 = vmatpush1.bf16.msra.mxu0 %v1647
        %1682 = vmatprep.subr.bf16.mxu0 0
        %1683 = vmatpush2.bf16.msra.mxu0 0
        %1684 = vmatprep.subr.bf16.mxu0 0
        %1685 = vmatpush2.bf16.msra.mxu0 0
        %1686 = vmatprep.subr.bf16.mxu0 0
        %1687 = vmatpush2.bf16.msra.mxu0 0
        %1688 = vmatprep.subr.bf16.mxu0 0
        %1689 = vmatpush2.bf16.msra.mxu0 0
        %1690 = vmatprep.subr.bf16.mxu0 0
        %1691 = vmatpush2.bf16.msra.mxu0 0
        %1692 = vmatprep.subr.bf16.mxu0 0
        %1693 = vmatpush2.bf16.msra.mxu0 0
        %1694 = vmatprep.subr.bf16.mxu0 0
        %1695 = vmatpush2.bf16.msra.mxu0 0
        %1696 = vmatprep.subr.bf16.mxu0 0
        %1697 = vmatpush2.bf16.msra.mxu0 0
        %1698 = vmatprep.mubr.bf16.mxu0 0
        %1699 = vmatmul.mubr.bf16.gmra.mxu0 %v1664
        %v1700 = vpop.f32.mrf.mxu0
        %v1701 = vadd.f32 %v1616, %v1700
        %v1702 = vpop.f32.mrf.mxu0
        %v1703 = vadd.f32 %v1620, %v1702
        %v1704 = vpop.f32.mrf.mxu0
        %v1705 = vpop.f32.mrf.mxu0
        %1706 = vdwg.mxu0
        %v1707 = vmax.f32 %v1701, 0.0
        %v1708 = vmax.f32 %v1703, 0.0
        %v1709 = vpack.c.bf16 %v1707, %v1707
        %v1710 = vpack.c.bf16 %v1708, %v1708
        %v1711 = vld [vmem:[%s19] sm:$0xf]
        %v1712 = vld [vmem:[%s19 + $0x4] sm:$0xf]
        %v1713 = vld [vmem:[%s19 + $0x8] sm:$0xf]
        %v1714 = vld [vmem:[%s19 + $0xc] sm:$0xf]
        %v1715 = vld [vmem:[%s19 + $0x10] sm:$0xf]
        %v1716 = vld [vmem:[%s19 + $0x14] sm:$0xf]
        %v1717 = vld [vmem:[%s19 + $0x18] sm:$0xf]
        %v1718 = vld [vmem:[%s19 + $0x1c] sm:$0xf]
        %v1719 = vld [vmem:[%s19 + $0x20] sm:$0xf]
        %v1720 = vld [vmem:[%s19 + $0x24] sm:$0xf]
        %v1721 = vld [vmem:[%s19 + $0x28] sm:$0xf]
        %v1722 = vld [vmem:[%s19 + $0x2c] sm:$0xf]
        %v1723 = vld [vmem:[%s19 + $0x30] sm:$0xf]
        %v1724 = vld [vmem:[%s19 + $0x34] sm:$0xf]
        %v1725 = vld [vmem:[%s19 + $0x38] sm:$0xf]
        %v1726 = vld [vmem:[%s19 + $0x3c] sm:$0xf]
        %v1727 = vld [vmem:[%s19 + $0x40] sm:$0xf]
        %v1728 = vld [vmem:[%s19 + $0x44] sm:$0xf]
        %v1729 = vld [vmem:[%s19 + $0x48] sm:$0xf]
        %v1730 = vld [vmem:[%s19 + $0x4c] sm:$0xf]
        %v1731 = vld [vmem:[%s19 + $0x50] sm:$0xf]
        %v1732 = vld [vmem:[%s19 + $0x54] sm:$0xf]
        %v1733 = vld [vmem:[%s19 + $0x58] sm:$0xf]
        %v1734 = vld [vmem:[%s19 + $0x5c] sm:$0xf]
        %v1735 = vld [vmem:[%s19 + $0x60] sm:$0xf]
        %v1736 = vld [vmem:[%s19 + $0x64] sm:$0xf]
        %v1737 = vld [vmem:[%s19 + $0x68] sm:$0xf]
        %v1738 = vld [vmem:[%s19 + $0x6c] sm:$0xf]
        %v1739 = vld [vmem:[%s19 + $0x70] sm:$0xf]
        %v1740 = vld [vmem:[%s19 + $0x74] sm:$0xf]
        %v1741 = vld [vmem:[%s19 + $0x78] sm:$0xf]
        %v1742 = vld [vmem:[%s19 + $0x7c] sm:$0xf]
        %v1775 = vunpack.c.l.b16 %v1711
        %v1776 = vunpack.c.l.b16 %v1712
        %v1777 = vunpack.c.l.b16 %v1713
        %v1778 = vunpack.c.l.b16 %v1714
        %v1779 = vunpack.c.l.b16 %v1715
        %v1780 = vunpack.c.l.b16 %v1716
        %v1781 = vunpack.c.l.b16 %v1717
        %v1782 = vunpack.c.l.b16 %v1718
        %v1783 = vunpack.c.l.b16 %v1719
        %v1784 = vunpack.c.l.b16 %v1720
        %v1785 = vunpack.c.l.b16 %v1721
        %v1786 = vunpack.c.l.b16 %v1722
        %v1787 = vunpack.c.l.b16 %v1723
        %v1788 = vunpack.c.l.b16 %v1724
        %v1789 = vunpack.c.l.b16 %v1725
        %v1790 = vunpack.c.l.b16 %v1726
        %v1791 = vunpack.c.l.b16 %v1727
        %v1792 = vunpack.c.l.b16 %v1728
        %v1793 = vunpack.c.l.b16 %v1729
        %v1794 = vunpack.c.l.b16 %v1730
        %v1795 = vunpack.c.l.b16 %v1731
        %v1796 = vunpack.c.l.b16 %v1732
        %v1797 = vunpack.c.l.b16 %v1733
        %v1798 = vunpack.c.l.b16 %v1734
        %v1799 = vunpack.c.l.b16 %v1735
        %v1800 = vunpack.c.l.b16 %v1736
        %v1801 = vunpack.c.l.b16 %v1737
        %v1802 = vunpack.c.l.b16 %v1738
        %v1803 = vunpack.c.l.b16 %v1739
        %v1804 = vunpack.c.l.b16 %v1740
        %v1805 = vunpack.c.l.b16 %v1741
        %v1806 = vunpack.c.l.b16 %v1742
        %v1807 = vpack.c.b16 %v1776, %v1775
        %v1808 = vpack.c.b16 %v1778, %v1777
        %v1809 = vpack.c.b16 %v1780, %v1779
        %v1810 = vpack.c.b16 %v1782, %v1781
        %v1811 = vpack.c.b16 %v1784, %v1783
        %v1812 = vpack.c.b16 %v1786, %v1785
        %v1813 = vpack.c.b16 %v1788, %v1787
        %v1814 = vpack.c.b16 %v1790, %v1789
        %v1815 = vpack.c.b16 %v1792, %v1791
        %v1816 = vpack.c.b16 %v1794, %v1793
        %v1817 = vpack.c.b16 %v1796, %v1795
        %v1818 = vpack.c.b16 %v1798, %v1797
        %v1819 = vpack.c.b16 %v1800, %v1799
        %v1820 = vpack.c.b16 %v1802, %v1801
        %v1821 = vpack.c.b16 %v1804, %v1803
        %v1822 = vpack.c.b16 %v1806, %v1805
        %1839 = vmatprep.subr.bf16.mxu0 0
        %1840 = vmatpush1.bf16.msra.mxu0 %v1814
        %1841 = vmatprep.subr.bf16.mxu0 0
        %1842 = vmatpush1.bf16.msra.mxu0 %v1813
        %1843 = vmatprep.subr.bf16.mxu0 0
        %1844 = vmatpush1.bf16.msra.mxu0 %v1812
        %1845 = vmatprep.subr.bf16.mxu0 0
        %1846 = vmatpush1.bf16.msra.mxu0 %v1811
        %1847 = vmatprep.subr.bf16.mxu0 0
        %1848 = vmatpush1.bf16.msra.mxu0 %v1810
        %1849 = vmatprep.subr.bf16.mxu0 0
        %1850 = vmatpush1.bf16.msra.mxu0 %v1809
        %1851 = vmatprep.subr.bf16.mxu0 0
        %1852 = vmatpush1.bf16.msra.mxu0 %v1808
        %1853 = vmatprep.subr.bf16.mxu0 0
        %1854 = vmatpush1.bf16.msra.mxu0 %v1807
        %1855 = vmatprep.subr.bf16.mxu0 0
        %1856 = vmatpush2.bf16.msra.mxu0 %v1822
        %1857 = vmatprep.subr.bf16.mxu0 0
        %1858 = vmatpush2.bf16.msra.mxu0 %v1821
        %1859 = vmatprep.subr.bf16.mxu0 0
        %1860 = vmatpush2.bf16.msra.mxu0 %v1820
        %1861 = vmatprep.subr.bf16.mxu0 0
        %1862 = vmatpush2.bf16.msra.mxu0 %v1819
        %1863 = vmatprep.subr.bf16.mxu0 0
        %1864 = vmatpush2.bf16.msra.mxu0 %v1818
        %1865 = vmatprep.subr.bf16.mxu0 0
        %1866 = vmatpush2.bf16.msra.mxu0 %v1817
        %1867 = vmatprep.subr.bf16.mxu0 0
        %1868 = vmatpush2.bf16.msra.mxu0 %v1816
        %1869 = vmatprep.subr.bf16.mxu0 0
        %1870 = vmatpush2.bf16.msra.mxu0 %v1815
        %1871 = vmatprep.mubr.bf16.mxu0 %v1710
        %1872 = vmatmul.mubr.bf16.gmra.mxu0 %v1709
        %v1873 = vpop.f32.mrf.mxu0
        %v1874 = vadd.f32 0.0, %v1873
        %v1875 = vpop.f32.mrf.mxu0
        %v1876 = vpop.f32.mrf.mxu0
        %v1877 = vpop.f32.mrf.mxu0
        %1878 = vdwg.mxu0
        %v1879 = vadd.f32 %v1578, %v1874
        %v1880 = vld [vmem:[%s20] sm:$0x1]
        %v1882 = vlaneseq
        %v1883 = vshrl.u32 %v1882, 7
        %v1884 = vsub.s32 0, %v1883
        %v1885 = vrot.slane %v1880, %v1884
        %v1887 = vadd.f32 %v1879, %v1885
        %1888 = vst.msk [vmem:[%s826] sm:$0xff] %vm864, %v1887
        %s1889 = sand.u32 %s533, 1
        %s1890 = scalar_lea.sflag [#allocation4], %s1889
        %s1891 = sand.u32 %s533, 1
        %s1892 = smul.addr %s1891, 8
        %s1893 = scalar_lea.vmem [#allocation13], %s1892
        // Predicated region
        $region129: #{tpu_custom_call.1} parent=103 // pred_check
          %p1894 = pneg %p543
        $region130: #{tpu_custom_call.1} parent=103 // pred_check_branch
          %1896 = sbr.rel (%p1894) target = $region132
        $region131: #{tpu_custom_call.1} parent=103 // pred_region
          %s1898 = ssub.s32 128, 128
          %1899 = vsyncadd %s1890, %s1898
          %s1900 = sadd.s32 %s48, %s47
          %s1901 = smul.addr %s1900, 128
          %s1902 = scalar_lea.hbm %s21, %s1901
          %s1904 = sshll.u32 %s1893, 4
          %s1905 = int_to_ptr.vmem [resolvable:$true] %s1904
          %1907 = dma.vmem_to_hbm [thread:$0]  %s1905, 128, %s1902, %s1890
        $region132: #{tpu_custom_call.1} parent=103 // pred_fallthru
          _
      $region104: #{tpu_custom_call.1} parent=5 // pred_fallthru
        _
      %p1908 = scmp.le.s32.totalorder 2, %s38
      // Predicated region
      $region133: #{tpu_custom_call.1} parent=5 // pred_check
        %p1909 = pneg %p1908
      $region134: #{tpu_custom_call.1} parent=5 // pred_check_branch
        %1911 = sbr.rel (%p1909) target = $region136
      $region135: #{tpu_custom_call.1} parent=5 // pred_region
        %s1912 = ssub.s32 %s38, 2
        // Predicated region
        $region137: #{tpu_custom_call.1} parent=135 // pred_check
          %p1913 = pneg %p549
        $region138: #{tpu_custom_call.1} parent=135 // pred_check_branch
          %1915 = sbr.rel (%p1913) target = $region140
        $region139: #{tpu_custom_call.1} parent=135 // pred_region
          %s1916 = sand.u32 %s534, 1
          %s1917 = scalar_lea.sflag [#allocation4], %s1916
          %s1918 = sand.u32 %s534, 1
          %s1919 = smul.addr %s1918, 8
          %s1920 = scalar_lea.vmem [#allocation13], %s1919
          %1921 = dma.done %s1917, 128
        $region140: #{tpu_custom_call.1} parent=135 // pred_fallthru
          _
      $region136: #{tpu_custom_call.1} parent=5 // pred_fallthru
        _
    $region6: #{tpu_custom_call.1} parent=1 // loop_footer
      %s42 = sadd.s32 1, %s38
    $region7: #{tpu_custom_call.1} parent=1 // loop_footer_branch
      %37 = sbr.rel target = $region3
    $region8: #{tpu_custom_call.1} parent=1 // loop_exit
      _
    %1922 = vsyncpa [#allocation3], 1
    %s1923 = scalar_lea.sflag [#allocation3], 1
    %1924 = vsyncpa %s1923, 1
    %1925 = vsyncpa [#allocation6], 1
    %s1926 = scalar_lea.sflag [#allocation6], 1
    %1927 = vsyncpa %s1926, 1
    %1928 = vsyncpa [#allocation9], 1
    %1929 = vsyncpa [#allocation12], 1
    %1930 = vsyncpa [#allocation4], 1
    %s1931 = scalar_lea.sflag [#allocation4], 1
    %1932 = vsyncpa %s1931, 1

</llo_original>
